<compile_context>
chip_gen: v7x
topology: tpu7x:2x2x1
jax: 0.10.0
libtpu: 0.0.40
codegen_flags: <defaults>
</compile_context>

<pallas_src>
import functools

import jax
import jax.numpy as jnp
from jax.experimental import pallas as pl
from jax.experimental.pallas import tpu as pltpu


def _round_up(n, m):
    return ((n + m - 1) // m) * m


def _has_bf16_valu():
    """bf16 VALU exists on v6e / v7x; older parts unpack/emulate bf16 elementwise."""
    try:
        kind = jax.devices()[0].device_kind.lower()
    except Exception:
        return False
    return any(tag in kind for tag in ("v6", "v7", "7x"))


def _mlp_kernel(x_ref, w1_ref, b1_ref, w2_ref, b2_ref, w3_ref, b3_ref,
                w4_ref, b4_ref, o_ref, *, use_bf16, bf16_epilogue):
    x = x_ref[...]                                           # (1, TN) f32, batch on lanes

    # Layer 1 (in_features=1): K=1 matmul degenerates -> VPU broadcast outer product.
    h = jnp.maximum(w1_ref[...] * x + b1_ref[...], 0.0)     # (128, TN) f32

    def mm(w_ref, h):
        # Weights are pre-cast in the wrapper; only the activation (if still
        # f32) needs a cast here.
        if use_bf16 and h.dtype != jnp.bfloat16:
            h = h.astype(jnp.bfloat16)
        return jnp.dot(w_ref[...], h, preferred_element_type=jnp.float32)

    # Layer 2: (256,128)@(128,TN) on the MXU, f32 accumulation.
    s2 = mm(w2_ref, h)
    if bf16_epilogue:
        # Bias + ReLU in packed bf16; result feeds the layer-3 MXU directly
        # (no separate cast pass).
        h = jnp.maximum(s2.astype(jnp.bfloat16) + b2_ref[...], 0)
    else:
        h = jnp.maximum(s2 + b2_ref[...], 0.0)

    # Layer 3: (128,256)@(256,TN); epilogue kept in f32 for the final reduction.
    h = jnp.maximum(mm(w3_ref, h) + b3_ref[...], 0.0)        # (128, TN) f32

    # Layer 4 (out_features=1): VPU broadcast-multiply + XLU sublane reduction
    # instead of streaming the whole (128, TN) activation through the MXU for
    # a single output row.  Output row stays lane-dense.
    o = jnp.sum(w4_ref[...] * h, axis=0, keepdims=True) + b4_ref[...]
    o_ref[...] = jnp.maximum(o, 0.0).astype(o_ref.dtype)


def prb_dens_forward(x, params, *, tn=2048, use_bf16=True, bf16_epilogue=None):
    """x: (N, 1) float32. Returns (N, 1) float32.

    Weights are stored PyTorch-style: W (out_features, in_features),
    b (out_features, 1). The kernel computes column-vector form
    y = relu(W @ h + b) with the batch on the 128-wide lane axis.
    """
    (w1, b1, w2, b2, w3, b3, w4, b4) = params
    N = x.shape[0]

    if bf16_epilogue is None:
        bf16_epilogue = use_bf16 and _has_bf16_valu()
    bf16_epilogue = bool(bf16_epilogue and use_bf16)

    # --- Tile selection ----------------------------------------------------
    # Big tile amortizes per-step overhead; cap so the grid keeps >= 2 steps
    # (2-TC megacore sharding on v7x); keep a multiple of 256 (lane-dense and
    # >= the MXU free dimension on every generation).
    tn = int(tn)
    if N > 2 * 256:
        tn = min(tn, _round_up(pl.cdiv(N, 2), 256))
    tn = max(256, _round_up(min(tn, max(N, 1)), 256))

    Np = _round_up(N, tn)
    xT = x.reshape(1, N)                           # lane-dense batch row
    if Np != N:
        # TODO(synk): the ragged tail could use an in-kernel lane mask instead
        # of pad+slice; padding is a negligible extra HBM pass for this input.
        xT = jnp.pad(xT, ((0, 0), (0, Np - N)))

    # --- Weight preparation (done once, outside the kernel) -----------------
    mm_dtype = jnp.bfloat16 if use_bf16 else jnp.float32
    w2c = w2.astype(mm_dtype)
    w3c = w3.astype(mm_dtype)
    b2c = b2.astype(jnp.bfloat16) if bf16_epilogue else b2
    w4c = w4.reshape(w4.shape[1], 1)               # (128, 1) column for the VPU dot

    weights = (w1, b1, w2c, b2c, w3c, b3, w4c, b4)
    w_specs = [pl.BlockSpec(a.shape, lambda i: (0, 0)) for a in weights]

    # --- VMEM budget / cost hint --------------------------------------------
    def _nbytes(a):
        return int(a.size) * a.dtype.itemsize

    param_bytes = sum(_nbytes(a) for a in weights)
    act_bytes = (128 + 256 + 128) * tn * 4                 # f32 intermediates
    if use_bf16:
        act_bytes += (128 + 256) * tn * 2                  # bf16 copies fed to the MXU
    io_bytes = 2 * 2 * tn * 4                              # double-buffered x / out tiles
    vmem_limit = int(min(56 << 20,
                         max(32 << 20, 2 * (act_bytes + io_bytes + 2 * param_bytes))))

    cost = pl.CostEstimate(
        flops=2 * Np * (128 + 128 * 256 + 256 * 128 + 128),
        transcendentals=0,
        bytes_accessed=4 * 2 * Np + param_bytes,
    )

    out = pl.pallas_call(
        functools.partial(_mlp_kernel, use_bf16=use_bf16, bf16_epilogue=bf16_epilogue),
        out_shape=jax.ShapeDtypeStruct((1, Np), jnp.float32),
        grid_spec=pl.GridSpec(
            grid=(Np // tn,),
            in_specs=[pl.BlockSpec((1, tn), lambda i: (0, i))] + w_specs,
            out_specs=pl.BlockSpec((1, tn), lambda i: (0, i)),   # lane-dense output
        ),
        compiler_params=pltpu.CompilerParams(
            dimension_semantics=("parallel",),
            vmem_limit_bytes=vmem_limit),
        cost_estimate=cost,
    )(xT, *weights)

    return out[0, :N].reshape(N, 1)


def init_params(key):
    """Deterministic init mimicking nn.Linear defaults (uniform +/- 1/sqrt(fan_in)).
    Weights stored PyTorch-style as (out_features, in_features); biases (out, 1)."""
    dims = [(1, 128), (128, 256), (256, 128), (128, 1)]
    params = []
    for (fan_in, fan_out) in dims:
        key, kw, kb = jax.random.split(key, 3)
        bound = float(1.0 / (fan_in ** 0.5))
        w = jax.random.uniform(kw, (fan_out, fan_in), jnp.float32, -bound, bound)
        b = jax.random.uniform(kb, (fan_out, 1), jnp.float32, -bound, bound)
        params += [w, b]
    return tuple(params)


def _reference(x, params):
    (w1, b1, w2, b2, w3, b3, w4, b4) = params
    h = jax.nn.relu(x @ w1.T + b1.T)
    h = jax.nn.relu(h @ w2.T + b2.T)
    h = jax.nn.relu(h @ w3.T + b3.T)
    return jax.nn.relu(h @ w4.T + b4.T)


if __name__ == "__main__":
    key = jax.random.PRNGKey(0)
    kp, kx = jax.random.split(key)
    params = init_params(kp)

    # Small batch of scalar samples, shape (N, 1) like the PyTorch module.
    # N deliberately not a multiple of the tile to exercise the pad/slice path
    # and to give the 2-step grid (v7x megacore) path coverage.
    N = 1000
    x = jax.random.normal(kx, (N, 1), jnp.float32)

    ref = _reference(x, params)

    # Exact f32 path (tight tolerance).
    out_f32 = jax.block_until_ready(prb_dens_forward(x, params, use_bf16=False))
    assert out_f32.shape == (N, 1)
    assert jnp.allclose(out_f32, ref, atol=1e-4, rtol=1e-5), "f32 kernel mismatch vs reference"

    # Default fast path: bf16 MXU (f32 accumulation), pre-cast weights,
    # bf16 epilogue auto-enabled on v6e/v7x.
    out_fast = jax.block_until_ready(prb_dens_forward(x, params))
    assert out_fast.shape == (N, 1)
    assert jnp.allclose(out_fast, ref, atol=5e-2, rtol=5e-2), "bf16 kernel drifted too far"

    print("KERNEL_OK")
</pallas_src>

<mosaic_0001>
module attributes {stable_mosaic.version = 11 : i64} {
  func.func @_mlp_kernel(%arg0: i32, %arg1: memref<1x512xf32, #tpu.memory_space<vmem>>, %arg2: memref<128x1xf32, #tpu.memory_space<vmem>>, %arg3: memref<128x1xf32, #tpu.memory_space<vmem>>, %arg4: memref<256x128xf32, #tpu.memory_space<vmem>>, %arg5: memref<256x1xf32, #tpu.memory_space<vmem>>, %arg6: memref<128x256xf32, #tpu.memory_space<vmem>>, %arg7: memref<128x1xf32, #tpu.memory_space<vmem>>, %arg8: memref<128x1xf32, #tpu.memory_space<vmem>>, %arg9: memref<1x1xf32, #tpu.memory_space<vmem>>, %arg10: memref<1x512xf32, #tpu.memory_space<vmem>>) attributes {dimension_semantics = [#tpu.dimension_semantics<parallel>], iteration_bounds = array<i64: 2>, scalar_prefetch = 0 : i64, scratch_operands = 0 : i64, tpu.core_type = #tpu.core_type<tc>, window_params = [{transform_indices = @transform_0, window_bounds = array<i64: 1, 512>}, {pipeline_mode = #tpu.pipeline_mode<synchronous>, transform_indices = @transform_1, window_bounds = array<i64: 128, 1>}, {pipeline_mode = #tpu.pipeline_mode<synchronous>, transform_indices = @transform_2, window_bounds = array<i64: 128, 1>}, {pipeline_mode = #tpu.pipeline_mode<synchronous>, transform_indices = @transform_3, window_bounds = array<i64: 256, 128>}, {pipeline_mode = #tpu.pipeline_mode<synchronous>, transform_indices = @transform_4, window_bounds = array<i64: 256, 1>}, {pipeline_mode = #tpu.pipeline_mode<synchronous>, transform_indices = @transform_5, window_bounds = array<i64: 128, 256>}, {pipeline_mode = #tpu.pipeline_mode<synchronous>, transform_indices = @transform_6, window_bounds = array<i64: 128, 1>}, {pipeline_mode = #tpu.pipeline_mode<synchronous>, transform_indices = @transform_7, window_bounds = array<i64: 128, 1>}, {pipeline_mode = #tpu.pipeline_mode<synchronous>, transform_indices = @transform_8, window_bounds = array<i64: 1, 1>}, {transform_indices = @transform_9, window_bounds = array<i64: 1, 512>}]} {
    %c0 = arith.constant 0 : index
    %c0_0 = arith.constant 0 : index
    %0 = vector.load %arg1[%c0, %c0_0] : memref<1x512xf32, #tpu.memory_space<vmem>>, vector<1x512xf32>
    %c0_1 = arith.constant 0 : index
    %c0_2 = arith.constant 0 : index
    %1 = vector.load %arg2[%c0_1, %c0_2] : memref<128x1xf32, #tpu.memory_space<vmem>>, vector<128x1xf32>
    %2 = vector.broadcast %1 : vector<128x1xf32> to vector<128x512xf32>
    %3 = vector.broadcast %0 : vector<1x512xf32> to vector<128x512xf32>
    %4 = arith.mulf %2, %3 : vector<128x512xf32>
    %c0_3 = arith.constant 0 : index
    %c0_4 = arith.constant 0 : index
    %5 = vector.load %arg3[%c0_3, %c0_4] : memref<128x1xf32, #tpu.memory_space<vmem>>, vector<128x1xf32>
    %6 = vector.broadcast %5 : vector<128x1xf32> to vector<128x512xf32>
    %7 = arith.addf %4, %6 : vector<128x512xf32>
    %cst = arith.constant 0.000000e+00 : f32
    %8 = vector.broadcast %cst : f32 to vector<128x512xf32>
    %9 = arith.maximumf %7, %8 : vector<128x512xf32>
    %c0_5 = arith.constant 0 : index
    %c0_6 = arith.constant 0 : index
    %10 = vector.load %arg4[%c0_5, %c0_6] : memref<256x128xf32, #tpu.memory_space<vmem>>, vector<256x128xf32>
    %cst_7 = arith.constant dense<0.000000e+00> : vector<256x512xf32>
    %11 = tpu.matmul %10, %9, %cst_7 {dimension_numbers = #tpu.dot_dimension_numbers<[1], [0], [0], [1], [0, 0, 1, 1], [], []>} : vector<256x128xf32>, vector<128x512xf32>, vector<256x512xf32> -> vector<256x512xf32>
    %c0_8 = arith.constant 0 : index
    %c0_9 = arith.constant 0 : index
    %12 = vector.load %arg5[%c0_8, %c0_9] : memref<256x1xf32, #tpu.memory_space<vmem>>, vector<256x1xf32>
    %13 = vector.broadcast %12 : vector<256x1xf32> to vector<256x512xf32>
    %14 = arith.addf %11, %13 : vector<256x512xf32>
    %cst_10 = arith.constant 0.000000e+00 : f32
    %15 = vector.broadcast %cst_10 : f32 to vector<256x512xf32>
    %16 = arith.maximumf %14, %15 : vector<256x512xf32>
    %c0_11 = arith.constant 0 : index
    %c0_12 = arith.constant 0 : index
    %17 = vector.load %arg6[%c0_11, %c0_12] : memref<128x256xf32, #tpu.memory_space<vmem>>, vector<128x256xf32>
    %cst_13 = arith.constant dense<0.000000e+00> : vector<128x512xf32>
    %18 = tpu.matmul %17, %16, %cst_13 {dimension_numbers = #tpu.dot_dimension_numbers<[1], [0], [0], [1], [0, 0, 1, 1], [], []>} : vector<128x256xf32>, vector<256x512xf32>, vector<128x512xf32> -> vector<128x512xf32>
    %c0_14 = arith.constant 0 : index
    %c0_15 = arith.constant 0 : index
    %19 = vector.load %arg7[%c0_14, %c0_15] : memref<128x1xf32, #tpu.memory_space<vmem>>, vector<128x1xf32>
    %20 = vector.broadcast %19 : vector<128x1xf32> to vector<128x512xf32>
    %21 = arith.addf %18, %20 : vector<128x512xf32>
    %cst_16 = arith.constant 0.000000e+00 : f32
    %22 = vector.broadcast %cst_16 : f32 to vector<128x512xf32>
    %23 = arith.maximumf %21, %22 : vector<128x512xf32>
    %c0_17 = arith.constant 0 : index
    %c0_18 = arith.constant 0 : index
    %24 = vector.load %arg8[%c0_17, %c0_18] : memref<128x1xf32, #tpu.memory_space<vmem>>, vector<128x1xf32>
    %25 = vector.broadcast %24 : vector<128x1xf32> to vector<128x512xf32>
    %26 = arith.mulf %25, %23 : vector<128x512xf32>
    %cst_19 = arith.constant dense<0.000000e+00> : vector<512xf32>
    %27 = vector.multi_reduction <add>, %26, %cst_19 [0] : vector<128x512xf32> to vector<512xf32>
    %28 = vector.shape_cast %27 : vector<512xf32> to vector<1x512xf32>
    %c0_20 = arith.constant 0 : index
    %c0_21 = arith.constant 0 : index
    %29 = vector.load %arg9[%c0_20, %c0_21] : memref<1x1xf32, #tpu.memory_space<vmem>>, vector<1x1xf32>
    %30 = vector.broadcast %29 : vector<1x1xf32> to vector<1x512xf32>
    %31 = arith.addf %28, %30 : vector<1x512xf32>
    %cst_22 = arith.constant 0.000000e+00 : f32
    %32 = vector.broadcast %cst_22 : f32 to vector<1x512xf32>
    %33 = arith.maximumf %31, %32 : vector<1x512xf32>
    %c0_23 = arith.constant 0 : index
    %c0_24 = arith.constant 0 : index
    %34 = vector.load %arg10[%c0_23, %c0_24] : memref<1x512xf32, #tpu.memory_space<vmem>>, vector<1x512xf32>
    tpu.vector_store %arg10[%c0_23, %c0_24], %33 {strides = array<i32>} : memref<1x512xf32, #tpu.memory_space<vmem>>, vector<1x512xf32>,
    return
  }
  func.func @transform_0(%arg0: i32) -> (i32, i32) {
    %c0_i32 = arith.constant 0 : i32
    %c0_i32_0 = arith.constant 0 : i32
    return %c0_i32, %arg0 : i32, i32
  }
  func.func @transform_1(%arg0: i32) -> (i32, i32) {
    %c0_i32 = arith.constant 0 : i32
    %c0_i32_0 = arith.constant 0 : i32
    %c0_i32_1 = arith.constant 0 : i32
    return %c0_i32, %c0_i32_0 : i32, i32
  }
  func.func @transform_2(%arg0: i32) -> (i32, i32) {
    %c0_i32 = arith.constant 0 : i32
    %c0_i32_0 = arith.constant 0 : i32
    %c0_i32_1 = arith.constant 0 : i32
    return %c0_i32, %c0_i32_0 : i32, i32
  }
  func.func @transform_3(%arg0: i32) -> (i32, i32) {
    %c0_i32 = arith.constant 0 : i32
    %c0_i32_0 = arith.constant 0 : i32
    %c0_i32_1 = arith.constant 0 : i32
    return %c0_i32, %c0_i32_0 : i32, i32
  }
  func.func @transform_4(%arg0: i32) -> (i32, i32) {
    %c0_i32 = arith.constant 0 : i32
    %c0_i32_0 = arith.constant 0 : i32
    %c0_i32_1 = arith.constant 0 : i32
    return %c0_i32, %c0_i32_0 : i32, i32
  }
  func.func @transform_5(%arg0: i32) -> (i32, i32) {
    %c0_i32 = arith.constant 0 : i32
    %c0_i32_0 = arith.constant 0 : i32
    %c0_i32_1 = arith.constant 0 : i32
    return %c0_i32, %c0_i32_0 : i32, i32
  }
  func.func @transform_6(%arg0: i32) -> (i32, i32) {
    %c0_i32 = arith.constant 0 : i32
    %c0_i32_0 = arith.constant 0 : i32
    %c0_i32_1 = arith.constant 0 : i32
    return %c0_i32, %c0_i32_0 : i32, i32
  }
  func.func @transform_7(%arg0: i32) -> (i32, i32) {
    %c0_i32 = arith.constant 0 : i32
    %c0_i32_0 = arith.constant 0 : i32
    %c0_i32_1 = arith.constant 0 : i32
    return %c0_i32, %c0_i32_0 : i32, i32
  }
  func.func @transform_8(%arg0: i32) -> (i32, i32) {
    %c0_i32 = arith.constant 0 : i32
    %c0_i32_0 = arith.constant 0 : i32
    %c0_i32_1 = arith.constant 0 : i32
    return %c0_i32, %c0_i32_0 : i32, i32
  }
  func.func @transform_9(%arg0: i32) -> (i32, i32) {
    %c0_i32 = arith.constant 0 : i32
    %c0_i32_0 = arith.constant 0 : i32
    return %c0_i32, %arg0 : i32, i32
  }
}

</mosaic_0001>

<llo_original>
// kernel: tpu_custom_call.1
$region0: #{tpu_custom_call.1}
  #allocation0 [shape = 'u32[]', space=smem, size = 0x4, offset = 0x4, fixed_abs, tag = 'smem constant byte address 0x4 - core index']
  #allocation1 [shape = 'u32[144,128]{1,0:T(1,128)}', space=vmem, size = 0x12000, scoped, tag = 'internal scratch']
  #allocation2 [shape = 'f32[1,1]{1,0:T(1,128)S(1)}', space=vmem, size = 0x200, scoped, tag = 'scoped memory for tpu_custom_call.1']
  %s0 = inlined_call_operand.vmem [shape: f32[1,1024], index: 0, kind: input, shape index: {}]
  %s1 = inlined_call_operand.vmem [shape: f32[128,1], index: 1, kind: input, shape index: {}]
  %s2 = inlined_call_operand.vmem [shape: f32[128,1], index: 2, kind: input, shape index: {}]
  %s3 = inlined_call_operand.vmem [shape: f32[256,128], index: 3, kind: input, shape index: {}]
  %s4 = inlined_call_operand.vmem [shape: f32[256,1], index: 4, kind: input, shape index: {}]
  %s5 = inlined_call_operand.vmem [shape: f32[128,256], index: 5, kind: input, shape index: {}]
  %s6 = inlined_call_operand.vmem [shape: f32[128,1], index: 6, kind: input, shape index: {}]
  %s7 = inlined_call_operand.vmem [shape: f32[128,1], index: 7, kind: input, shape index: {}]
  %s8 = inlined_call_operand.<no memory space> [shape: f32[1,1], index: 8, kind: input, shape index: {}]
  %s9 = inlined_call_operand.hbm [shape: f32[1,1024], index: 9, kind: output, shape index: {}]
  %s10 = sld [smem:[#allocation0]]
  $region69: #{tpu_custom_call.1} parent=0
    _
  %s12 = ssub.s32 1, %s10
  %s13 = scalar_select 0, %s12, %s10
  %v14 = vstv %s8
  %15 = vst [vmem:[#allocation2] sm:$0x1] %v14
  $region1: #{tpu_custom_call.1} parent=0
    #allocation3 [shape = 'u8[4096]{0}', space=vmem, size = 0x1000, scoped, tag = 'output window, operand 0']
    #allocation4 [shape = 's32[2]{0}', space=sflag, size = 0x8, scoped, tag = 'scoped memory for tpu_custom_call.1']
    %16 = vsyncpa [#allocation4], 0
    %s17 = scalar_lea.sflag [#allocation4], 1
    %18 = vsyncpa %s17, 0
    loop: start=0, step=1, limit=4
    $region2: #{tpu_custom_call.1} parent=1 // loop_pre_header
      _
    $region3: #{tpu_custom_call.1} parent=1 // loop_header
      %s20 = sphi 0, %s24
      %p21 = scmp.ge.s32.totalorder %s20, 4
      %s30 = sphi 0, %s32
      %s33 = sphi 0, %s30
      %s34 = sphi 0, %s33
      %s50 = sphi 0, %s34
      %s54 = sphi 0, %s54
      %s56 = sphi 0, %s54
      %s57 = sphi 0, %s56
      %s71 = sphi 0, %s57
      %s75 = sphi 0, %s75
      %s77 = sphi 0, %s75
      %s78 = sphi 0, %s77
      %s92 = sphi 0, %s78
      %s96 = sphi 0, %s96
      %s98 = sphi 0, %s96
      %s99 = sphi 0, %s98
      %s113 = sphi 0, %s99
      %s117 = sphi 0, %s117
      %s119 = sphi 0, %s117
      %s120 = sphi 0, %s119
      %s134 = sphi 0, %s120
      %s138 = sphi 0, %s138
      %s140 = sphi 0, %s138
      %s141 = sphi 0, %s140
      %s155 = sphi 0, %s141
      %s159 = sphi 0, %s159
      %s161 = sphi 0, %s159
      %s162 = sphi 0, %s161
      %s176 = sphi 0, %s162
      %s180 = sphi 0, %s180
      %s182 = sphi 0, %s180
      %s183 = sphi 0, %s182
      %s197 = sphi 0, %s183
      %s201 = sphi 0, %s201
      %s203 = sphi 0, %s201
      %s204 = sphi 0, %s203
      %s218 = sphi 0, %s204
      %s224 = sphi 0, %s226
      %s227 = sphi 0, %s224
      %s228 = sphi 0, %s227
      %s244 = sphi 0, %s228
    $region4: #{tpu_custom_call.1} parent=1 // loop_header_branch
      %23 = sbr.rel (%p21) target = $region8
    $region5: #{tpu_custom_call.1} parent=1 // loop_body
      %s25 = ssub.s32 %s20, 1
      %s26 = ssub.s32 %s20, 2
      %s27 = sadd.s32 %s20, 1
      %s28 = ssub.s32 %s20, %s27
      %p29 = scmp.eq.s32.totalorder %s28, 0
      %s31 = sadd.s32 %s30, 1
      %s32 = scalar_select %p29, %s30, %s31
      %p35 = pneg %p29
      %p36 = scmp.eq.s32.totalorder %s20, 1
      %p37 = por %p35, %p36
      %p38 = scmp.ne.s32.totalorder %s30, %s33
      %p39 = scmp.eq.s32.totalorder %s20, 0
      %p40 = por %p38, %p39
      %p41 = scmp.ne.s32.totalorder %s30, %s33
      %p42 = scmp.eq.s32.totalorder %s25, 1
      %p43 = por %p41, %p42
      %p44 = scmp.ne.s32.totalorder %s33, %s34
      %p45 = scmp.eq.s32.totalorder %s25, 0
      %p46 = por %p44, %p45
      %p47 = scmp.ne.s32.totalorder %s33, %s34
      %p48 = scmp.eq.s32.totalorder %s26, 1
      %p49 = por %p47, %p48
      %p51 = scmp.ne.s32.totalorder %s34, %s50
      %p52 = scmp.eq.s32.totalorder %s26, 0
      %p53 = por %p51, %p52
      %s55 = sadd.s32 %s54, 1
      %p58 = scmp.eq.s32.totalorder %s20, 1
      %p59 = scmp.ne.s32.totalorder %s54, %s56
      %p60 = scmp.eq.s32.totalorder %s20, 0
      %p61 = por %p59, %p60
      %p62 = scmp.ne.s32.totalorder %s54, %s56
      %p63 = scmp.eq.s32.totalorder %s25, 1
      %p64 = por %p62, %p63
      %p65 = scmp.ne.s32.totalorder %s56, %s57
      %p66 = scmp.eq.s32.totalorder %s25, 0
      %p67 = por %p65, %p66
      %p68 = scmp.ne.s32.totalorder %s56, %s57
      %p69 = scmp.eq.s32.totalorder %s26, 1
      %p70 = por %p68, %p69
      %p72 = scmp.ne.s32.totalorder %s57, %s71
      %p73 = scmp.eq.s32.totalorder %s26, 0
      %p74 = por %p72, %p73
      %s76 = sadd.s32 %s75, 1
      %p79 = scmp.eq.s32.totalorder %s20, 1
      %p80 = scmp.ne.s32.totalorder %s75, %s77
      %p81 = scmp.eq.s32.totalorder %s20, 0
      %p82 = por %p80, %p81
      %p83 = scmp.ne.s32.totalorder %s75, %s77
      %p84 = scmp.eq.s32.totalorder %s25, 1
      %p85 = por %p83, %p84
      %p86 = scmp.ne.s32.totalorder %s77, %s78
      %p87 = scmp.eq.s32.totalorder %s25, 0
      %p88 = por %p86, %p87
      %p89 = scmp.ne.s32.totalorder %s77, %s78
      %p90 = scmp.eq.s32.totalorder %s26, 1
      %p91 = por %p89, %p90
      %p93 = scmp.ne.s32.totalorder %s78, %s92
      %p94 = scmp.eq.s32.totalorder %s26, 0
      %p95 = por %p93, %p94
      %s97 = sadd.s32 %s96, 1
      %p100 = scmp.eq.s32.totalorder %s20, 1
      %p101 = scmp.ne.s32.totalorder %s96, %s98
      %p102 = scmp.eq.s32.totalorder %s20, 0
      %p103 = por %p101, %p102
      %p104 = scmp.ne.s32.totalorder %s96, %s98
      %p105 = scmp.eq.s32.totalorder %s25, 1
      %p106 = por %p104, %p105
      %p107 = scmp.ne.s32.totalorder %s98, %s99
      %p108 = scmp.eq.s32.totalorder %s25, 0
      %p109 = por %p107, %p108
      %p110 = scmp.ne.s32.totalorder %s98, %s99
      %p111 = scmp.eq.s32.totalorder %s26, 1
      %p112 = por %p110, %p111
      %p114 = scmp.ne.s32.totalorder %s99, %s113
      %p115 = scmp.eq.s32.totalorder %s26, 0
      %p116 = por %p114, %p115
      %s118 = sadd.s32 %s117, 1
      %p121 = scmp.eq.s32.totalorder %s20, 1
      %p122 = scmp.ne.s32.totalorder %s117, %s119
      %p123 = scmp.eq.s32.totalorder %s20, 0
      %p124 = por %p122, %p123
      %p125 = scmp.ne.s32.totalorder %s117, %s119
      %p126 = scmp.eq.s32.totalorder %s25, 1
      %p127 = por %p125, %p126
      %p128 = scmp.ne.s32.totalorder %s119, %s120
      %p129 = scmp.eq.s32.totalorder %s25, 0
      %p130 = por %p128, %p129
      %p131 = scmp.ne.s32.totalorder %s119, %s120
      %p132 = scmp.eq.s32.totalorder %s26, 1
      %p133 = por %p131, %p132
      %p135 = scmp.ne.s32.totalorder %s120, %s134
      %p136 = scmp.eq.s32.totalorder %s26, 0
      %p137 = por %p135, %p136
      %s139 = sadd.s32 %s138, 1
      %p142 = scmp.eq.s32.totalorder %s20, 1
      %p143 = scmp.ne.s32.totalorder %s138, %s140
      %p144 = scmp.eq.s32.totalorder %s20, 0
      %p145 = por %p143, %p144
      %p146 = scmp.ne.s32.totalorder %s138, %s140
      %p147 = scmp.eq.s32.totalorder %s25, 1
      %p148 = por %p146, %p147
      %p149 = scmp.ne.s32.totalorder %s140, %s141
      %p150 = scmp.eq.s32.totalorder %s25, 0
      %p151 = por %p149, %p150
      %p152 = scmp.ne.s32.totalorder %s140, %s141
      %p153 = scmp.eq.s32.totalorder %s26, 1
      %p154 = por %p152, %p153
      %p156 = scmp.ne.s32.totalorder %s141, %s155
      %p157 = scmp.eq.s32.totalorder %s26, 0
      %p158 = por %p156, %p157
      %s160 = sadd.s32 %s159, 1
      %p163 = scmp.eq.s32.totalorder %s20, 1
      %p164 = scmp.ne.s32.totalorder %s159, %s161
      %p165 = scmp.eq.s32.totalorder %s20, 0
      %p166 = por %p164, %p165
      %p167 = scmp.ne.s32.totalorder %s159, %s161
      %p168 = scmp.eq.s32.totalorder %s25, 1
      %p169 = por %p167, %p168
      %p170 = scmp.ne.s32.totalorder %s161, %s162
      %p171 = scmp.eq.s32.totalorder %s25, 0
      %p172 = por %p170, %p171
      %p173 = scmp.ne.s32.totalorder %s161, %s162
      %p174 = scmp.eq.s32.totalorder %s26, 1
      %p175 = por %p173, %p174
      %p177 = scmp.ne.s32.totalorder %s162, %s176
      %p178 = scmp.eq.s32.totalorder %s26, 0
      %p179 = por %p177, %p178
      %s181 = sadd.s32 %s180, 1
      %p184 = scmp.eq.s32.totalorder %s20, 1
      %p185 = scmp.ne.s32.totalorder %s180, %s182
      %p186 = scmp.eq.s32.totalorder %s20, 0
      %p187 = por %p185, %p186
      %p188 = scmp.ne.s32.totalorder %s180, %s182
      %p189 = scmp.eq.s32.totalorder %s25, 1
      %p190 = por %p188, %p189
      %p191 = scmp.ne.s32.totalorder %s182, %s183
      %p192 = scmp.eq.s32.totalorder %s25, 0
      %p193 = por %p191, %p192
      %p194 = scmp.ne.s32.totalorder %s182, %s183
      %p195 = scmp.eq.s32.totalorder %s26, 1
      %p196 = por %p194, %p195
      %p198 = scmp.ne.s32.totalorder %s183, %s197
      %p199 = scmp.eq.s32.totalorder %s26, 0
      %p200 = por %p198, %p199
      %s202 = sadd.s32 %s201, 1
      %p205 = scmp.eq.s32.totalorder %s20, 1
      %p206 = scmp.ne.s32.totalorder %s201, %s203
      %p207 = scmp.eq.s32.totalorder %s20, 0
      %p208 = por %p206, %p207
      %p209 = scmp.ne.s32.totalorder %s201, %s203
      %p210 = scmp.eq.s32.totalorder %s25, 1
      %p211 = por %p209, %p210
      %p212 = scmp.ne.s32.totalorder %s203, %s204
      %p213 = scmp.eq.s32.totalorder %s25, 0
      %p214 = por %p212, %p213
      %p215 = scmp.ne.s32.totalorder %s203, %s204
      %p216 = scmp.eq.s32.totalorder %s26, 1
      %p217 = por %p215, %p216
      %p219 = scmp.ne.s32.totalorder %s204, %s218
      %p220 = scmp.eq.s32.totalorder %s26, 0
      %p221 = por %p219, %p220
      %s222 = ssub.s32 %s20, %s27
      %p223 = scmp.eq.s32.totalorder %s222, 0
      %s225 = sadd.s32 %s224, 1
      %s226 = scalar_select %p223, %s224, %s225
      %p229 = pneg %p223
      %p230 = scmp.eq.s32.totalorder %s20, 1
      %p231 = por %p229, %p230
      %p232 = scmp.ne.s32.totalorder %s224, %s227
      %p233 = scmp.eq.s32.totalorder %s20, 0
      %p234 = por %p232, %p233
      %p235 = scmp.ne.s32.totalorder %s224, %s227
      %p236 = scmp.eq.s32.totalorder %s25, 1
      %p237 = por %p235, %p236
      %p238 = scmp.ne.s32.totalorder %s227, %s228
      %p239 = scmp.eq.s32.totalorder %s25, 0
      %p240 = por %p238, %p239
      %p241 = scmp.ne.s32.totalorder %s227, %s228
      %p242 = scmp.eq.s32.totalorder %s26, 1
      %p243 = por %p241, %p242
      %p245 = scmp.ne.s32.totalorder %s228, %s244
      %p246 = scmp.eq.s32.totalorder %s26, 0
      %p247 = por %p245, %p246
      %p248 = scmp.le.s32.totalorder 1, %s20
      %p249 = scmp.lt.s32.totalorder %s20, 3
      %p250 = pnand %p248, %p249
      %p251 = pneg %p250
      // Predicated region
      $region9: #{tpu_custom_call.1} parent=5 // pred_check
        _
      $region10: #{tpu_custom_call.1} parent=5 // pred_check_branch
        %253 = sbr.rel (%p250) target = $region12
      $region11: #{tpu_custom_call.1} parent=5 // pred_region
        %s254 = ssub.s32 %s20, 1
        // Predicated region
        $region13: #{tpu_custom_call.1} parent=11 // pred_check
          %p255 = pneg %p67
        $region14: #{tpu_custom_call.1} parent=11 // pred_check_branch
          %257 = sbr.rel (%p255) target = $region16
        $region15: #{tpu_custom_call.1} parent=11 // pred_region
          _
        $region16: #{tpu_custom_call.1} parent=11 // pred_fallthru
          _
        // Predicated region
        $region17: #{tpu_custom_call.1} parent=11 // pred_check
          %p258 = pneg %p88
        $region18: #{tpu_custom_call.1} parent=11 // pred_check_branch
          %260 = sbr.rel (%p258) target = $region20
        $region19: #{tpu_custom_call.1} parent=11 // pred_region
          _
        $region20: #{tpu_custom_call.1} parent=11 // pred_fallthru
          _
        // Predicated region
        $region21: #{tpu_custom_call.1} parent=11 // pred_check
          %p261 = pneg %p109
        $region22: #{tpu_custom_call.1} parent=11 // pred_check_branch
          %263 = sbr.rel (%p261) target = $region24
        $region23: #{tpu_custom_call.1} parent=11 // pred_region
          _
        $region24: #{tpu_custom_call.1} parent=11 // pred_fallthru
          _
        // Predicated region
        $region25: #{tpu_custom_call.1} parent=11 // pred_check
          %p264 = pneg %p130
        $region26: #{tpu_custom_call.1} parent=11 // pred_check_branch
          %266 = sbr.rel (%p264) target = $region28
        $region27: #{tpu_custom_call.1} parent=11 // pred_region
          _
        $region28: #{tpu_custom_call.1} parent=11 // pred_fallthru
          _
        // Predicated region
        $region29: #{tpu_custom_call.1} parent=11 // pred_check
          %p267 = pneg %p151
        $region30: #{tpu_custom_call.1} parent=11 // pred_check_branch
          %269 = sbr.rel (%p267) target = $region32
        $region31: #{tpu_custom_call.1} parent=11 // pred_region
          _
        $region32: #{tpu_custom_call.1} parent=11 // pred_fallthru
          _
        // Predicated region
        $region33: #{tpu_custom_call.1} parent=11 // pred_check
          %p270 = pneg %p172
        $region34: #{tpu_custom_call.1} parent=11 // pred_check_branch
          %272 = sbr.rel (%p270) target = $region36
        $region35: #{tpu_custom_call.1} parent=11 // pred_region
          _
        $region36: #{tpu_custom_call.1} parent=11 // pred_fallthru
          _
        // Predicated region
        $region37: #{tpu_custom_call.1} parent=11 // pred_check
          %p273 = pneg %p193
        $region38: #{tpu_custom_call.1} parent=11 // pred_check_branch
          %275 = sbr.rel (%p273) target = $region40
        $region39: #{tpu_custom_call.1} parent=11 // pred_region
          _
        $region40: #{tpu_custom_call.1} parent=11 // pred_fallthru
          _
        // Predicated region
        $region41: #{tpu_custom_call.1} parent=11 // pred_check
          %p276 = pneg %p214
        $region42: #{tpu_custom_call.1} parent=11 // pred_check_branch
          %278 = sbr.rel (%p276) target = $region44
        $region43: #{tpu_custom_call.1} parent=11 // pred_region
          _
        $region44: #{tpu_custom_call.1} parent=11 // pred_fallthru
          _
      $region12: #{tpu_custom_call.1} parent=5 // pred_fallthru
        _
      %p279 = scmp.lt.s32.totalorder %s20, 2
      // Predicated region
      $region45: #{tpu_custom_call.1} parent=5 // pred_check
        %p280 = pneg %p279
      $region46: #{tpu_custom_call.1} parent=5 // pred_check_branch
        %282 = sbr.rel (%p280) target = $region48
      $region47: #{tpu_custom_call.1} parent=5 // pred_region
        // Predicated region
        $region49: #{tpu_custom_call.1} parent=47 // pred_check
          %p283 = pneg %p40
        $region50: #{tpu_custom_call.1} parent=47 // pred_check_branch
          %285 = sbr.rel (%p283) target = $region52
        $region51: #{tpu_custom_call.1} parent=47 // pred_region
          %s286 = smul.u32 4, %s20
          %p287 = scmp.lt.s32.totalorder %s286, 7
          %s288 = scalar_select %p287, %s286, 7
          %s289 = scalar_lea.vmem %s0, %s288
          %s290 = smul.u32 4, %s20
        $region52: #{tpu_custom_call.1} parent=47 // pred_fallthru
          _
      $region48: #{tpu_custom_call.1} parent=5 // pred_fallthru
        _
      %p291 = scmp.le.s32.totalorder 1, %s20
      %p292 = scmp.lt.s32.totalorder %s20, 3
      %p293 = pnand %p291, %p292
      %p294 = pneg %p293
      // Predicated region
      $region53: #{tpu_custom_call.1} parent=5 // pred_check
        _
      $region54: #{tpu_custom_call.1} parent=5 // pred_check_branch
        %296 = sbr.rel (%p293) target = $region56
      $region55: #{tpu_custom_call.1} parent=5 // pred_region
        %s297 = ssub.s32 %s20, 1
        %s298 = smul.u32 4, %s25
        %p299 = scmp.lt.s32.totalorder %s298, 7
        %s300 = scalar_select %p299, %s298, 7
        %s301 = scalar_lea.vmem %s0, %s300
        %p302 = pneg %p46
        %p303 = pneg %p43
        %p304 = pneg %p67
        %p305 = pneg %p64
        %p306 = pneg %p88
        %p307 = pneg %p85
        %p308 = pneg %p109
        %p309 = pneg %p106
        %p310 = pneg %p130
        %p311 = pneg %p127
        %p312 = pneg %p151
        %p313 = pneg %p148
        %p314 = pneg %p172
        %p315 = pneg %p169
        %p316 = pneg %p193
        %p317 = pneg %p190
        %p318 = pneg %p214
        %p319 = pneg %p211
        %p320 = pneg %p240
        %p321 = pneg %p237
        %s322 = sand.u32 %s227, 1
        %s323 = scalar_lea.sflag [#allocation4], %s322
        %s324 = sand.u32 %s227, 1
        %s325 = smul.addr %s324, 4
        %s326 = scalar_lea.vmem [#allocation3], %s325
        %s327 = smul.u32 4, %s25
        %p328 = scmp.lt.s32.totalorder %s327, 7
        %s329 = scalar_select %p328, %s327, 7
        %s330 = scalar_lea.vmem %s0, %s329
        %s331 = smul.u32 4, %s25
        %s332 = smul.u32 4, %s25
        %v333 = vld [vmem:[%s330] sm:$0xf]
        %v334 = vld [vmem:[%s1] sm:$0xff]
        %v335 = vld [vmem:[%s1 + $0x8] sm:$0xff]
        %v336 = vld [vmem:[%s1 + $0x10] sm:$0xff]
        %v337 = vld [vmem:[%s1 + $0x18] sm:$0xff]
        %v338 = vld [vmem:[%s1 + $0x20] sm:$0xff]
        %v339 = vld [vmem:[%s1 + $0x28] sm:$0xff]
        %v340 = vld [vmem:[%s1 + $0x30] sm:$0xff]
        %v341 = vld [vmem:[%s1 + $0x38] sm:$0xff]
        %v342 = vld [vmem:[%s1 + $0x40] sm:$0xff]
        %v343 = vld [vmem:[%s1 + $0x48] sm:$0xff]
        %v344 = vld [vmem:[%s1 + $0x50] sm:$0xff]
        %v345 = vld [vmem:[%s1 + $0x58] sm:$0xff]
        %v346 = vld [vmem:[%s1 + $0x60] sm:$0xff]
        %v347 = vld [vmem:[%s1 + $0x68] sm:$0xff]
        %v348 = vld [vmem:[%s1 + $0x70] sm:$0xff]
        %v349 = vld [vmem:[%s1 + $0x78] sm:$0xff]
        %351 = vset.pattern.permute.xlu0 0
        %352 = vperm.xlu0 %351, %v334
        %v353 = vpop.permute.xlu0 %352
        %356 = vset.pattern.permute.xlu0 0
        %357 = vperm.xlu0 %356, %v335
        %v358 = vpop.permute.xlu0 %357
        %361 = vset.pattern.permute.xlu0 0
        %362 = vperm.xlu0 %361, %v336
        %v363 = vpop.permute.xlu0 %362
        %366 = vset.pattern.permute.xlu0 0
        %367 = vperm.xlu0 %366, %v337
        %v368 = vpop.permute.xlu0 %367
        %371 = vset.pattern.permute.xlu0 0
        %372 = vperm.xlu0 %371, %v338
        %v373 = vpop.permute.xlu0 %372
        %376 = vset.pattern.permute.xlu0 0
        %377 = vperm.xlu0 %376, %v339
        %v378 = vpop.permute.xlu0 %377
        %381 = vset.pattern.permute.xlu0 0
        %382 = vperm.xlu0 %381, %v340
        %v383 = vpop.permute.xlu0 %382
        %386 = vset.pattern.permute.xlu0 0
        %387 = vperm.xlu0 %386, %v341
        %v388 = vpop.permute.xlu0 %387
        %391 = vset.pattern.permute.xlu0 0
        %392 = vperm.xlu0 %391, %v342
        %v393 = vpop.permute.xlu0 %392
        %396 = vset.pattern.permute.xlu0 0
        %397 = vperm.xlu0 %396, %v343
        %v398 = vpop.permute.xlu0 %397
        %401 = vset.pattern.permute.xlu0 0
        %402 = vperm.xlu0 %401, %v344
        %v403 = vpop.permute.xlu0 %402
        %406 = vset.pattern.permute.xlu0 0
        %407 = vperm.xlu0 %406, %v345
        %v408 = vpop.permute.xlu0 %407
        %411 = vset.pattern.permute.xlu0 0
        %412 = vperm.xlu0 %411, %v346
        %v413 = vpop.permute.xlu0 %412
        %416 = vset.pattern.permute.xlu0 0
        %417 = vperm.xlu0 %416, %v347
        %v418 = vpop.permute.xlu0 %417
        %421 = vset.pattern.permute.xlu0 0
        %422 = vperm.xlu0 %421, %v348
        %v423 = vpop.permute.xlu0 %422
        %426 = vset.pattern.permute.xlu0 0
        %427 = vperm.xlu0 %426, %v349
        %v428 = vpop.permute.xlu0 %427
        %v431 = vlaneseq
        %v432 = vshrl.u32 %v431, 7
        %v433 = vsub.s32 0, %v432
        %v434 = vrot.slane %v333, %v433
        %v435 = vlaneseq
        %v436 = vshrl.u32 %v435, 7
        %v437 = vsub.s32 1, %v436
        %v438 = vrot.slane %v333, %v437
        %v439 = vlaneseq
        %v440 = vshrl.u32 %v439, 7
        %v441 = vsub.s32 2, %v440
        %v442 = vrot.slane %v333, %v441
        %v443 = vlaneseq
        %v444 = vshrl.u32 %v443, 7
        %v445 = vsub.s32 3, %v444
        %v446 = vrot.slane %v333, %v445
        %v451 = vmul.f32 %v353, %v434
        %v452 = vmul.f32 %v353, %v438
        %v453 = vmul.f32 %v353, %v442
        %v454 = vmul.f32 %v353, %v446
        %v455 = vmul.f32 %v358, %v434
        %v456 = vmul.f32 %v358, %v438
        %v457 = vmul.f32 %v358, %v442
        %v458 = vmul.f32 %v358, %v446
        %v459 = vmul.f32 %v363, %v434
        %v460 = vmul.f32 %v363, %v438
        %v461 = vmul.f32 %v363, %v442
        %v462 = vmul.f32 %v363, %v446
        %v463 = vmul.f32 %v368, %v434
        %v464 = vmul.f32 %v368, %v438
        %v465 = vmul.f32 %v368, %v442
        %v466 = vmul.f32 %v368, %v446
        %v467 = vmul.f32 %v373, %v434
        %v468 = vmul.f32 %v373, %v438
        %v469 = vmul.f32 %v373, %v442
        %v470 = vmul.f32 %v373, %v446
        %v471 = vmul.f32 %v378, %v434
        %v472 = vmul.f32 %v378, %v438
        %v473 = vmul.f32 %v378, %v442
        %v474 = vmul.f32 %v378, %v446
        %v475 = vmul.f32 %v383, %v434
        %v476 = vmul.f32 %v383, %v438
        %v477 = vmul.f32 %v383, %v442
        %v478 = vmul.f32 %v383, %v446
        %v479 = vmul.f32 %v388, %v434
        %v480 = vmul.f32 %v388, %v438
        %v481 = vmul.f32 %v388, %v442
        %v482 = vmul.f32 %v388, %v446
        %v483 = vmul.f32 %v393, %v434
        %v484 = vmul.f32 %v393, %v438
        %v485 = vmul.f32 %v393, %v442
        %v486 = vmul.f32 %v393, %v446
        %v487 = vmul.f32 %v398, %v434
        %v488 = vmul.f32 %v398, %v438
        %v489 = vmul.f32 %v398, %v442
        %v490 = vmul.f32 %v398, %v446
        %v491 = vmul.f32 %v403, %v434
        %v492 = vmul.f32 %v403, %v438
        %v493 = vmul.f32 %v403, %v442
        %v494 = vmul.f32 %v403, %v446
        %v495 = vmul.f32 %v408, %v434
        %v496 = vmul.f32 %v408, %v438
        %v497 = vmul.f32 %v408, %v442
        %v498 = vmul.f32 %v408, %v446
        %v499 = vmul.f32 %v413, %v434
        %v500 = vmul.f32 %v413, %v438
        %v501 = vmul.f32 %v413, %v442
        %v502 = vmul.f32 %v413, %v446
        %v503 = vmul.f32 %v418, %v434
        %v504 = vmul.f32 %v418, %v438
        %v505 = vmul.f32 %v418, %v442
        %v506 = vmul.f32 %v418, %v446
        %v507 = vmul.f32 %v423, %v434
        %v508 = vmul.f32 %v423, %v438
        %v509 = vmul.f32 %v423, %v442
        %v510 = vmul.f32 %v423, %v446
        %v511 = vmul.f32 %v428, %v434
        %v512 = vmul.f32 %v428, %v438
        %v513 = vmul.f32 %v428, %v442
        %v514 = vmul.f32 %v428, %v446
        %v515 = vld [vmem:[%s2] sm:$0xff]
        %v516 = vld [vmem:[%s2 + $0x8] sm:$0xff]
        %v517 = vld [vmem:[%s2 + $0x10] sm:$0xff]
        %v518 = vld [vmem:[%s2 + $0x18] sm:$0xff]
        %v519 = vld [vmem:[%s2 + $0x20] sm:$0xff]
        %v520 = vld [vmem:[%s2 + $0x28] sm:$0xff]
        %v521 = vld [vmem:[%s2 + $0x30] sm:$0xff]
        %v522 = vld [vmem:[%s2 + $0x38] sm:$0xff]
        %v523 = vld [vmem:[%s2 + $0x40] sm:$0xff]
        %v524 = vld [vmem:[%s2 + $0x48] sm:$0xff]
        %v525 = vld [vmem:[%s2 + $0x50] sm:$0xff]
        %v526 = vld [vmem:[%s2 + $0x58] sm:$0xff]
        %v527 = vld [vmem:[%s2 + $0x60] sm:$0xff]
        %v528 = vld [vmem:[%s2 + $0x68] sm:$0xff]
        %v529 = vld [vmem:[%s2 + $0x70] sm:$0xff]
        %v530 = vld [vmem:[%s2 + $0x78] sm:$0xff]
        %532 = vset.pattern.permute.xlu0 0
        %533 = vperm.xlu0 %532, %v515
        %v534 = vpop.permute.xlu0 %533
        %537 = vset.pattern.permute.xlu0 0
        %538 = vperm.xlu0 %537, %v516
        %v539 = vpop.permute.xlu0 %538
        %542 = vset.pattern.permute.xlu0 0
        %543 = vperm.xlu0 %542, %v517
        %v544 = vpop.permute.xlu0 %543
        %547 = vset.pattern.permute.xlu0 0
        %548 = vperm.xlu0 %547, %v518
        %v549 = vpop.permute.xlu0 %548
        %552 = vset.pattern.permute.xlu0 0
        %553 = vperm.xlu0 %552, %v519
        %v554 = vpop.permute.xlu0 %553
        %557 = vset.pattern.permute.xlu0 0
        %558 = vperm.xlu0 %557, %v520
        %v559 = vpop.permute.xlu0 %558
        %562 = vset.pattern.permute.xlu0 0
        %563 = vperm.xlu0 %562, %v521
        %v564 = vpop.permute.xlu0 %563
        %567 = vset.pattern.permute.xlu0 0
        %568 = vperm.xlu0 %567, %v522
        %v569 = vpop.permute.xlu0 %568
        %572 = vset.pattern.permute.xlu0 0
        %573 = vperm.xlu0 %572, %v523
        %v574 = vpop.permute.xlu0 %573
        %577 = vset.pattern.permute.xlu0 0
        %578 = vperm.xlu0 %577, %v524
        %v579 = vpop.permute.xlu0 %578
        %582 = vset.pattern.permute.xlu0 0
        %583 = vperm.xlu0 %582, %v525
        %v584 = vpop.permute.xlu0 %583
        %587 = vset.pattern.permute.xlu0 0
        %588 = vperm.xlu0 %587, %v526
        %v589 = vpop.permute.xlu0 %588
        %592 = vset.pattern.permute.xlu0 0
        %593 = vperm.xlu0 %592, %v527
        %v594 = vpop.permute.xlu0 %593
        %597 = vset.pattern.permute.xlu0 0
        %598 = vperm.xlu0 %597, %v528
        %v599 = vpop.permute.xlu0 %598
        %602 = vset.pattern.permute.xlu0 0
        %603 = vperm.xlu0 %602, %v529
        %v604 = vpop.permute.xlu0 %603
        %607 = vset.pattern.permute.xlu0 0
        %608 = vperm.xlu0 %607, %v530
        %v609 = vpop.permute.xlu0 %608
        %v611 = vadd.f32 %v451, %v534
        %v612 = vadd.f32 %v452, %v534
        %v613 = vadd.f32 %v453, %v534
        %v614 = vadd.f32 %v454, %v534
        %v615 = vadd.f32 %v455, %v539
        %v616 = vadd.f32 %v456, %v539
        %v617 = vadd.f32 %v457, %v539
        %v618 = vadd.f32 %v458, %v539
        %v619 = vadd.f32 %v459, %v544
        %v620 = vadd.f32 %v460, %v544
        %v621 = vadd.f32 %v461, %v544
        %v622 = vadd.f32 %v462, %v544
        %v623 = vadd.f32 %v463, %v549
        %v624 = vadd.f32 %v464, %v549
        %v625 = vadd.f32 %v465, %v549
        %v626 = vadd.f32 %v466, %v549
        %v627 = vadd.f32 %v467, %v554
        %v628 = vadd.f32 %v468, %v554
        %v629 = vadd.f32 %v469, %v554
        %v630 = vadd.f32 %v470, %v554
        %v631 = vadd.f32 %v471, %v559
        %v632 = vadd.f32 %v472, %v559
        %v633 = vadd.f32 %v473, %v559
        %v634 = vadd.f32 %v474, %v559
        %v635 = vadd.f32 %v475, %v564
        %v636 = vadd.f32 %v476, %v564
        %v637 = vadd.f32 %v477, %v564
        %v638 = vadd.f32 %v478, %v564
        %v639 = vadd.f32 %v479, %v569
        %v640 = vadd.f32 %v480, %v569
        %v641 = vadd.f32 %v481, %v569
        %v642 = vadd.f32 %v482, %v569
        %v643 = vadd.f32 %v483, %v574
        %v644 = vadd.f32 %v484, %v574
        %v645 = vadd.f32 %v485, %v574
        %v646 = vadd.f32 %v486, %v574
        %v647 = vadd.f32 %v487, %v579
        %v648 = vadd.f32 %v488, %v579
        %v649 = vadd.f32 %v489, %v579
        %v650 = vadd.f32 %v490, %v579
        %v651 = vadd.f32 %v491, %v584
        %v652 = vadd.f32 %v492, %v584
        %v653 = vadd.f32 %v493, %v584
        %v654 = vadd.f32 %v494, %v584
        %v655 = vadd.f32 %v495, %v589
        %v656 = vadd.f32 %v496, %v589
        %v657 = vadd.f32 %v497, %v589
        %v658 = vadd.f32 %v498, %v589
        %v659 = vadd.f32 %v499, %v594
        %v660 = vadd.f32 %v500, %v594
        %v661 = vadd.f32 %v501, %v594
        %v662 = vadd.f32 %v502, %v594
        %v663 = vadd.f32 %v503, %v599
        %v664 = vadd.f32 %v504, %v599
        %v665 = vadd.f32 %v505, %v599
        %v666 = vadd.f32 %v506, %v599
        %v667 = vadd.f32 %v507, %v604
        %v668 = vadd.f32 %v508, %v604
        %v669 = vadd.f32 %v509, %v604
        %v670 = vadd.f32 %v510, %v604
        %v671 = vadd.f32 %v511, %v609
        %v672 = vadd.f32 %v512, %v609
        %v673 = vadd.f32 %v513, %v609
        %v674 = vadd.f32 %v514, %v609
        %v675 = vmax.f32 %v611, 0.0
        %v676 = vmax.f32 %v612, 0.0
        %v677 = vmax.f32 %v613, 0.0
        %v678 = vmax.f32 %v614, 0.0
        %v679 = vmax.f32 %v615, 0.0
        %v680 = vmax.f32 %v616, 0.0
        %v681 = vmax.f32 %v617, 0.0
        %v682 = vmax.f32 %v618, 0.0
        %v683 = vmax.f32 %v619, 0.0
        %v684 = vmax.f32 %v620, 0.0
        %v685 = vmax.f32 %v621, 0.0
        %v686 = vmax.f32 %v622, 0.0
        %v687 = vmax.f32 %v623, 0.0
        %v688 = vmax.f32 %v624, 0.0
        %v689 = vmax.f32 %v625, 0.0
        %v690 = vmax.f32 %v626, 0.0
        %v691 = vmax.f32 %v627, 0.0
        %v692 = vmax.f32 %v628, 0.0
        %v693 = vmax.f32 %v629, 0.0
        %v694 = vmax.f32 %v630, 0.0
        %v695 = vmax.f32 %v631, 0.0
        %v696 = vmax.f32 %v632, 0.0
        %v697 = vmax.f32 %v633, 0.0
        %v698 = vmax.f32 %v634, 0.0
        %v699 = vmax.f32 %v635, 0.0
        %v700 = vmax.f32 %v636, 0.0
        %v701 = vmax.f32 %v637, 0.0
        %v702 = vmax.f32 %v638, 0.0
        %v703 = vmax.f32 %v639, 0.0
        %v704 = vmax.f32 %v640, 0.0
        %v705 = vmax.f32 %v641, 0.0
        %v706 = vmax.f32 %v642, 0.0
        %v707 = vmax.f32 %v643, 0.0
        %v708 = vmax.f32 %v644, 0.0
        %v709 = vmax.f32 %v645, 0.0
        %v710 = vmax.f32 %v646, 0.0
        %v711 = vmax.f32 %v647, 0.0
        %v712 = vmax.f32 %v648, 0.0
        %v713 = vmax.f32 %v649, 0.0
        %v714 = vmax.f32 %v650, 0.0
        %v715 = vmax.f32 %v651, 0.0
        %v716 = vmax.f32 %v652, 0.0
        %v717 = vmax.f32 %v653, 0.0
        %v718 = vmax.f32 %v654, 0.0
        %v719 = vmax.f32 %v655, 0.0
        %v720 = vmax.f32 %v656, 0.0
        %v721 = vmax.f32 %v657, 0.0
        %v722 = vmax.f32 %v658, 0.0
        %v723 = vmax.f32 %v659, 0.0
        %v724 = vmax.f32 %v660, 0.0
        %v725 = vmax.f32 %v661, 0.0
        %v726 = vmax.f32 %v662, 0.0
        %v727 = vmax.f32 %v663, 0.0
        %v728 = vmax.f32 %v664, 0.0
        %v729 = vmax.f32 %v665, 0.0
        %v730 = vmax.f32 %v666, 0.0
        %v731 = vmax.f32 %v667, 0.0
        %v732 = vmax.f32 %v668, 0.0
        %v733 = vmax.f32 %v669, 0.0
        %v734 = vmax.f32 %v670, 0.0
        %v735 = vmax.f32 %v671, 0.0
        %v736 = vmax.f32 %v672, 0.0
        %v737 = vmax.f32 %v673, 0.0
        %v738 = vmax.f32 %v674, 0.0
        %v739 = vld [vmem:[%s3] sm:$0xff]
        %v740 = vld [vmem:[%s3 + $0x8] sm:$0xff]
        %v741 = vld [vmem:[%s3 + $0x10] sm:$0xff]
        %v742 = vld [vmem:[%s3 + $0x18] sm:$0xff]
        %v743 = vld [vmem:[%s3 + $0x20] sm:$0xff]
        %v744 = vld [vmem:[%s3 + $0x28] sm:$0xff]
        %v745 = vld [vmem:[%s3 + $0x30] sm:$0xff]
        %v746 = vld [vmem:[%s3 + $0x38] sm:$0xff]
        %v747 = vld [vmem:[%s3 + $0x40] sm:$0xff]
        %v748 = vld [vmem:[%s3 + $0x48] sm:$0xff]
        %v749 = vld [vmem:[%s3 + $0x50] sm:$0xff]
        %v750 = vld [vmem:[%s3 + $0x58] sm:$0xff]
        %v751 = vld [vmem:[%s3 + $0x60] sm:$0xff]
        %v752 = vld [vmem:[%s3 + $0x68] sm:$0xff]
        %v753 = vld [vmem:[%s3 + $0x70] sm:$0xff]
        %v754 = vld [vmem:[%s3 + $0x78] sm:$0xff]
        %v755 = vld [vmem:[%s3 + $0x80] sm:$0xff]
        %v756 = vld [vmem:[%s3 + $0x88] sm:$0xff]
        %v757 = vld [vmem:[%s3 + $0x90] sm:$0xff]
        %v758 = vld [vmem:[%s3 + $0x98] sm:$0xff]
        %v759 = vld [vmem:[%s3 + $0xa0] sm:$0xff]
        %v760 = vld [vmem:[%s3 + $0xa8] sm:$0xff]
        %v761 = vld [vmem:[%s3 + $0xb0] sm:$0xff]
        %v762 = vld [vmem:[%s3 + $0xb8] sm:$0xff]
        %v763 = vld [vmem:[%s3 + $0xc0] sm:$0xff]
        %v764 = vld [vmem:[%s3 + $0xc8] sm:$0xff]
        %v765 = vld [vmem:[%s3 + $0xd0] sm:$0xff]
        %v766 = vld [vmem:[%s3 + $0xd8] sm:$0xff]
        %v767 = vld [vmem:[%s3 + $0xe0] sm:$0xff]
        %v768 = vld [vmem:[%s3 + $0xe8] sm:$0xff]
        %v769 = vld [vmem:[%s3 + $0xf0] sm:$0xff]
        %v770 = vld [vmem:[%s3 + $0xf8] sm:$0xff]
        %v771 = vld [vmem:[%s4] sm:$0xff]
        %v772 = vld [vmem:[%s4 + $0x8] sm:$0xff]
        %v773 = vld [vmem:[%s4 + $0x10] sm:$0xff]
        %v774 = vld [vmem:[%s4 + $0x18] sm:$0xff]
        %v775 = vld [vmem:[%s4 + $0x20] sm:$0xff]
        %v776 = vld [vmem:[%s4 + $0x28] sm:$0xff]
        %v777 = vld [vmem:[%s4 + $0x30] sm:$0xff]
        %v778 = vld [vmem:[%s4 + $0x38] sm:$0xff]
        %v779 = vld [vmem:[%s4 + $0x40] sm:$0xff]
        %v780 = vld [vmem:[%s4 + $0x48] sm:$0xff]
        %v781 = vld [vmem:[%s4 + $0x50] sm:$0xff]
        %v782 = vld [vmem:[%s4 + $0x58] sm:$0xff]
        %v783 = vld [vmem:[%s4 + $0x60] sm:$0xff]
        %v784 = vld [vmem:[%s4 + $0x68] sm:$0xff]
        %v785 = vld [vmem:[%s4 + $0x70] sm:$0xff]
        %v786 = vld [vmem:[%s4 + $0x78] sm:$0xff]
        %v787 = vld [vmem:[%s4 + $0x80] sm:$0xff]
        %v788 = vld [vmem:[%s4 + $0x88] sm:$0xff]
        %v789 = vld [vmem:[%s4 + $0x90] sm:$0xff]
        %v790 = vld [vmem:[%s4 + $0x98] sm:$0xff]
        %v791 = vld [vmem:[%s4 + $0xa0] sm:$0xff]
        %v792 = vld [vmem:[%s4 + $0xa8] sm:$0xff]
        %v793 = vld [vmem:[%s4 + $0xb0] sm:$0xff]
        %v794 = vld [vmem:[%s4 + $0xb8] sm:$0xff]
        %v795 = vld [vmem:[%s4 + $0xc0] sm:$0xff]
        %v796 = vld [vmem:[%s4 + $0xc8] sm:$0xff]
        %v797 = vld [vmem:[%s4 + $0xd0] sm:$0xff]
        %v798 = vld [vmem:[%s4 + $0xd8] sm:$0xff]
        %v799 = vld [vmem:[%s4 + $0xe0] sm:$0xff]
        %v800 = vld [vmem:[%s4 + $0xe8] sm:$0xff]
        %v801 = vld [vmem:[%s4 + $0xf0] sm:$0xff]
        %v802 = vld [vmem:[%s4 + $0xf8] sm:$0xff]
        %804 = vset.pattern.permute.xlu0 0
        %805 = vperm.xlu0 %804, %v771
        %v806 = vpop.permute.xlu0 %805
        %809 = vset.pattern.permute.xlu0 0
        %810 = vperm.xlu0 %809, %v772
        %v811 = vpop.permute.xlu0 %810
        %814 = vset.pattern.permute.xlu0 0
        %815 = vperm.xlu0 %814, %v773
        %v816 = vpop.permute.xlu0 %815
        %819 = vset.pattern.permute.xlu0 0
        %820 = vperm.xlu0 %819, %v774
        %v821 = vpop.permute.xlu0 %820
        %824 = vset.pattern.permute.xlu0 0
        %825 = vperm.xlu0 %824, %v775
        %v826 = vpop.permute.xlu0 %825
        %829 = vset.pattern.permute.xlu0 0
        %830 = vperm.xlu0 %829, %v776
        %v831 = vpop.permute.xlu0 %830
        %834 = vset.pattern.permute.xlu0 0
        %835 = vperm.xlu0 %834, %v777
        %v836 = vpop.permute.xlu0 %835
        %839 = vset.pattern.permute.xlu0 0
        %840 = vperm.xlu0 %839, %v778
        %v841 = vpop.permute.xlu0 %840
        %844 = vset.pattern.permute.xlu0 0
        %845 = vperm.xlu0 %844, %v779
        %v846 = vpop.permute.xlu0 %845
        %849 = vset.pattern.permute.xlu0 0
        %850 = vperm.xlu0 %849, %v780
        %v851 = vpop.permute.xlu0 %850
        %854 = vset.pattern.permute.xlu0 0
        %855 = vperm.xlu0 %854, %v781
        %v856 = vpop.permute.xlu0 %855
        %859 = vset.pattern.permute.xlu0 0
        %860 = vperm.xlu0 %859, %v782
        %v861 = vpop.permute.xlu0 %860
        %864 = vset.pattern.permute.xlu0 0
        %865 = vperm.xlu0 %864, %v783
        %v866 = vpop.permute.xlu0 %865
        %869 = vset.pattern.permute.xlu0 0
        %870 = vperm.xlu0 %869, %v784
        %v871 = vpop.permute.xlu0 %870
        %874 = vset.pattern.permute.xlu0 0
        %875 = vperm.xlu0 %874, %v785
        %v876 = vpop.permute.xlu0 %875
        %879 = vset.pattern.permute.xlu0 0
        %880 = vperm.xlu0 %879, %v786
        %v881 = vpop.permute.xlu0 %880
        %884 = vset.pattern.permute.xlu0 0
        %885 = vperm.xlu0 %884, %v787
        %v886 = vpop.permute.xlu0 %885
        %889 = vset.pattern.permute.xlu0 0
        %890 = vperm.xlu0 %889, %v788
        %v891 = vpop.permute.xlu0 %890
        %894 = vset.pattern.permute.xlu0 0
        %895 = vperm.xlu0 %894, %v789
        %v896 = vpop.permute.xlu0 %895
        %899 = vset.pattern.permute.xlu0 0
        %900 = vperm.xlu0 %899, %v790
        %v901 = vpop.permute.xlu0 %900
        %904 = vset.pattern.permute.xlu0 0
        %905 = vperm.xlu0 %904, %v791
        %v906 = vpop.permute.xlu0 %905
        %909 = vset.pattern.permute.xlu0 0
        %910 = vperm.xlu0 %909, %v792
        %v911 = vpop.permute.xlu0 %910
        %914 = vset.pattern.permute.xlu0 0
        %915 = vperm.xlu0 %914, %v793
        %v916 = vpop.permute.xlu0 %915
        %919 = vset.pattern.permute.xlu0 0
        %920 = vperm.xlu0 %919, %v794
        %v921 = vpop.permute.xlu0 %920
        %924 = vset.pattern.permute.xlu0 0
        %925 = vperm.xlu0 %924, %v795
        %v926 = vpop.permute.xlu0 %925
        %929 = vset.pattern.permute.xlu0 0
        %930 = vperm.xlu0 %929, %v796
        %v931 = vpop.permute.xlu0 %930
        %934 = vset.pattern.permute.xlu0 0
        %935 = vperm.xlu0 %934, %v797
        %v936 = vpop.permute.xlu0 %935
        %939 = vset.pattern.permute.xlu0 0
        %940 = vperm.xlu0 %939, %v798
        %v941 = vpop.permute.xlu0 %940
        %944 = vset.pattern.permute.xlu0 0
        %945 = vperm.xlu0 %944, %v799
        %v946 = vpop.permute.xlu0 %945
        %949 = vset.pattern.permute.xlu0 0
        %950 = vperm.xlu0 %949, %v800
        %v951 = vpop.permute.xlu0 %950
        %954 = vset.pattern.permute.xlu0 0
        %955 = vperm.xlu0 %954, %v801
        %v956 = vpop.permute.xlu0 %955
        %959 = vset.pattern.permute.xlu0 0
        %960 = vperm.xlu0 %959, %v802
        %v961 = vpop.permute.xlu0 %960
        %963 = vmatprep.subr.mxu0 %v676
        %964 = vmatpush1.msra.mxu0 %v675
        %965 = vmatprep.subr.mxu0 %v680
        %966 = vmatpush1.msra.mxu0 %v679
        %967 = vmatprep.subr.mxu0 %v684
        %968 = vmatpush1.msra.mxu0 %v683
        %969 = vmatprep.subr.mxu0 %v688
        %970 = vmatpush1.msra.mxu0 %v687
        %971 = vmatprep.subr.mxu0 %v692
        %972 = vmatpush1.msra.mxu0 %v691
        %973 = vmatprep.subr.mxu0 %v696
        %974 = vmatpush1.msra.mxu0 %v695
        %975 = vmatprep.subr.mxu0 %v700
        %976 = vmatpush1.msra.mxu0 %v699
        %977 = vmatprep.subr.mxu0 %v704
        %978 = vmatpush1.msra.mxu0 %v703
        %979 = vmatprep.subr.mxu0 %v708
        %980 = vmatpush1.msra.mxu0 %v707
        %981 = vmatprep.subr.mxu0 %v712
        %982 = vmatpush1.msra.mxu0 %v711
        %983 = vmatprep.subr.mxu0 %v716
        %984 = vmatpush1.msra.mxu0 %v715
        %985 = vmatprep.subr.mxu0 %v720
        %986 = vmatpush1.msra.mxu0 %v719
        %987 = vmatprep.subr.mxu0 %v724
        %988 = vmatpush1.msra.mxu0 %v723
        %989 = vmatprep.subr.mxu0 %v728
        %990 = vmatpush1.msra.mxu0 %v727
        %991 = vmatprep.subr.mxu0 %v732
        %992 = vmatpush1.msra.mxu0 %v731
        %993 = vmatprep.subr.mxu0 %v736
        %994 = vmatpush1.msra.mxu0 %v735
        %995 = vmatprep.subr.mxu0 0.0
        %996 = vmatpush1.msra.mxu0 0.0
        %997 = vmatprep.subr.mxu0 0.0
        %998 = vmatpush1.msra.mxu0 0.0
        %999 = vmatprep.subr.mxu0 0.0
        %1000 = vmatpush1.msra.mxu0 0.0
        %1001 = vmatprep.subr.mxu0 0.0
        %1002 = vmatpush1.msra.mxu0 0.0
        %1003 = vmatprep.subr.mxu0 0.0
        %1004 = vmatpush1.msra.mxu0 0.0
        %1005 = vmatprep.subr.mxu0 0.0
        %1006 = vmatpush1.msra.mxu0 0.0
        %1007 = vmatprep.subr.mxu0 0.0
        %1008 = vmatpush1.msra.mxu0 0.0
        %1009 = vmatprep.subr.mxu0 0.0
        %1010 = vmatpush1.msra.mxu0 0.0
        %1011 = vmatprep.subr.mxu0 0.0
        %1012 = vmatpush1.msra.mxu0 0.0
        %1013 = vmatprep.subr.mxu0 0.0
        %1014 = vmatpush1.msra.mxu0 0.0
        %1015 = vmatprep.subr.mxu0 0.0
        %1016 = vmatpush1.msra.mxu0 0.0
        %1017 = vmatprep.subr.mxu0 0.0
        %1018 = vmatpush1.msra.mxu0 0.0
        %1019 = vmatprep.subr.mxu0 0.0
        %1020 = vmatpush1.msra.mxu0 0.0
        %1021 = vmatprep.subr.mxu0 0.0
        %1022 = vmatpush1.msra.mxu0 0.0
        %1023 = vmatprep.subr.mxu0 0.0
        %1024 = vmatpush1.msra.mxu0 0.0
        %1025 = vmatprep.subr.mxu0 0.0
        %1026 = vmatpush1.msra.mxu0 0.0
        %1027 = vmatprep.mubr.f32.mxu0 0.0
        %1028 = vmatmul.mubr.f32.gmra.mrb[0].mxu0 %v739
        %v1029 = vpop.f32.mrb[0].mxu0
        %v1030 = vadd.f32 %v806, %v1029
        %v1031 = vpop.f32.mrb[0].mxu0
        %v1032 = vadd.f32 %v806, %v1031
        %1033 = vmatprep.mubr.f32.mxu0 0.0
        %1034 = vmatmul.mubr.f32.gmra.mrb[0].mxu0 %v740
        %v1035 = vpop.f32.mrb[0].mxu0
        %v1036 = vadd.f32 %v811, %v1035
        %v1037 = vpop.f32.mrb[0].mxu0
        %v1038 = vadd.f32 %v811, %v1037
        %1039 = vmatprep.mubr.f32.mxu0 0.0
        %1040 = vmatmul.mubr.f32.gmra.mrb[0].mxu0 %v741
        %v1041 = vpop.f32.mrb[0].mxu0
        %v1042 = vadd.f32 %v816, %v1041
        %v1043 = vpop.f32.mrb[0].mxu0
        %v1044 = vadd.f32 %v816, %v1043
        %1045 = vmatprep.mubr.f32.mxu0 0.0
        %1046 = vmatmul.mubr.f32.gmra.mrb[0].mxu0 %v742
        %v1047 = vpop.f32.mrb[0].mxu0
        %v1048 = vadd.f32 %v821, %v1047
        %v1049 = vpop.f32.mrb[0].mxu0
        %v1050 = vadd.f32 %v821, %v1049
        %1051 = vmatprep.mubr.f32.mxu0 0.0
        %1052 = vmatmul.mubr.f32.gmra.mrb[0].mxu0 %v743
        %v1053 = vpop.f32.mrb[0].mxu0
        %v1054 = vadd.f32 %v826, %v1053
        %v1055 = vpop.f32.mrb[0].mxu0
        %v1056 = vadd.f32 %v826, %v1055
        %1057 = vmatprep.mubr.f32.mxu0 0.0
        %1058 = vmatmul.mubr.f32.gmra.mrb[0].mxu0 %v744
        %v1059 = vpop.f32.mrb[0].mxu0
        %v1060 = vadd.f32 %v831, %v1059
        %v1061 = vpop.f32.mrb[0].mxu0
        %v1062 = vadd.f32 %v831, %v1061
        %1063 = vmatprep.mubr.f32.mxu0 0.0
        %1064 = vmatmul.mubr.f32.gmra.mrb[0].mxu0 %v745
        %v1065 = vpop.f32.mrb[0].mxu0
        %v1066 = vadd.f32 %v836, %v1065
        %v1067 = vpop.f32.mrb[0].mxu0
        %v1068 = vadd.f32 %v836, %v1067
        %1069 = vmatprep.mubr.f32.mxu0 0.0
        %1070 = vmatmul.mubr.f32.gmra.mrb[0].mxu0 %v746
        %v1071 = vpop.f32.mrb[0].mxu0
        %v1072 = vadd.f32 %v841, %v1071
        %v1073 = vpop.f32.mrb[0].mxu0
        %v1074 = vadd.f32 %v841, %v1073
        %1075 = vmatprep.mubr.f32.mxu0 0.0
        %1076 = vmatmul.mubr.f32.gmra.mrb[0].mxu0 %v747
        %v1077 = vpop.f32.mrb[0].mxu0
        %v1078 = vadd.f32 %v846, %v1077
        %v1079 = vpop.f32.mrb[0].mxu0
        %v1080 = vadd.f32 %v846, %v1079
        %1081 = vmatprep.mubr.f32.mxu0 0.0
        %1082 = vmatmul.mubr.f32.gmra.mrb[0].mxu0 %v748
        %v1083 = vpop.f32.mrb[0].mxu0
        %v1084 = vadd.f32 %v851, %v1083
        %v1085 = vpop.f32.mrb[0].mxu0
        %v1086 = vadd.f32 %v851, %v1085
        %1087 = vmatprep.mubr.f32.mxu0 0.0
        %1088 = vmatmul.mubr.f32.gmra.mrb[0].mxu0 %v749
        %v1089 = vpop.f32.mrb[0].mxu0
        %v1090 = vadd.f32 %v856, %v1089
        %v1091 = vpop.f32.mrb[0].mxu0
        %v1092 = vadd.f32 %v856, %v1091
        %1093 = vmatprep.mubr.f32.mxu0 0.0
        %1094 = vmatmul.mubr.f32.gmra.mrb[0].mxu0 %v750
        %v1095 = vpop.f32.mrb[0].mxu0
        %v1096 = vadd.f32 %v861, %v1095
        %v1097 = vpop.f32.mrb[0].mxu0
        %v1098 = vadd.f32 %v861, %v1097
        %1099 = vmatprep.mubr.f32.mxu0 0.0
        %1100 = vmatmul.mubr.f32.gmra.mrb[0].mxu0 %v751
        %v1101 = vpop.f32.mrb[0].mxu0
        %v1102 = vadd.f32 %v866, %v1101
        %v1103 = vpop.f32.mrb[0].mxu0
        %v1104 = vadd.f32 %v866, %v1103
        %1105 = vmatprep.mubr.f32.mxu0 0.0
        %1106 = vmatmul.mubr.f32.gmra.mrb[0].mxu0 %v752
        %v1107 = vpop.f32.mrb[0].mxu0
        %v1108 = vadd.f32 %v871, %v1107
        %v1109 = vpop.f32.mrb[0].mxu0
        %v1110 = vadd.f32 %v871, %v1109
        %1111 = vmatprep.mubr.f32.mxu0 0.0
        %1112 = vmatmul.mubr.f32.gmra.mrb[0].mxu0 %v753
        %v1113 = vpop.f32.mrb[0].mxu0
        %v1114 = vadd.f32 %v876, %v1113
        %v1115 = vpop.f32.mrb[0].mxu0
        %v1116 = vadd.f32 %v876, %v1115
        %1117 = vmatprep.mubr.f32.mxu0 0.0
        %1118 = vmatmul.mubr.f32.gmra.mrb[0].mxu0 %v754
        %v1119 = vpop.f32.mrb[0].mxu0
        %v1120 = vadd.f32 %v881, %v1119
        %v1121 = vpop.f32.mrb[0].mxu0
        %v1122 = vadd.f32 %v881, %v1121
        %1123 = vmatprep.mubr.f32.mxu0 0.0
        %1124 = vmatmul.mubr.f32.gmra.mrb[0].mxu0 %v755
        %v1125 = vpop.f32.mrb[0].mxu0
        %v1126 = vadd.f32 %v886, %v1125
        %v1127 = vpop.f32.mrb[0].mxu0
        %v1128 = vadd.f32 %v886, %v1127
        %1129 = vmatprep.mubr.f32.mxu0 0.0
        %1130 = vmatmul.mubr.f32.gmra.mrb[0].mxu0 %v756
        %v1131 = vpop.f32.mrb[0].mxu0
        %v1132 = vadd.f32 %v891, %v1131
        %v1133 = vpop.f32.mrb[0].mxu0
        %v1134 = vadd.f32 %v891, %v1133
        %1135 = vmatprep.mubr.f32.mxu0 0.0
        %1136 = vmatmul.mubr.f32.gmra.mrb[0].mxu0 %v757
        %v1137 = vpop.f32.mrb[0].mxu0
        %v1138 = vadd.f32 %v896, %v1137
        %v1139 = vpop.f32.mrb[0].mxu0
        %v1140 = vadd.f32 %v896, %v1139
        %1141 = vmatprep.mubr.f32.mxu0 0.0
        %1142 = vmatmul.mubr.f32.gmra.mrb[0].mxu0 %v758
        %v1143 = vpop.f32.mrb[0].mxu0
        %v1144 = vadd.f32 %v901, %v1143
        %v1145 = vpop.f32.mrb[0].mxu0
        %v1146 = vadd.f32 %v901, %v1145
        %1147 = vmatprep.mubr.f32.mxu0 0.0
        %1148 = vmatmul.mubr.f32.gmra.mrb[0].mxu0 %v759
        %v1149 = vpop.f32.mrb[0].mxu0
        %v1150 = vadd.f32 %v906, %v1149
        %v1151 = vpop.f32.mrb[0].mxu0
        %v1152 = vadd.f32 %v906, %v1151
        %1153 = vmatprep.mubr.f32.mxu0 0.0
        %1154 = vmatmul.mubr.f32.gmra.mrb[0].mxu0 %v760
        %v1155 = vpop.f32.mrb[0].mxu0
        %v1156 = vadd.f32 %v911, %v1155
        %v1157 = vpop.f32.mrb[0].mxu0
        %v1158 = vadd.f32 %v911, %v1157
        %1159 = vmatprep.mubr.f32.mxu0 0.0
        %1160 = vmatmul.mubr.f32.gmra.mrb[0].mxu0 %v761
        %v1161 = vpop.f32.mrb[0].mxu0
        %v1162 = vadd.f32 %v916, %v1161
        %v1163 = vpop.f32.mrb[0].mxu0
        %v1164 = vadd.f32 %v916, %v1163
        %1165 = vmatprep.mubr.f32.mxu0 0.0
        %1166 = vmatmul.mubr.f32.gmra.mrb[0].mxu0 %v762
        %v1167 = vpop.f32.mrb[0].mxu0
        %v1168 = vadd.f32 %v921, %v1167
        %v1169 = vpop.f32.mrb[0].mxu0
        %v1170 = vadd.f32 %v921, %v1169
        %1171 = vmatprep.mubr.f32.mxu0 0.0
        %1172 = vmatmul.mubr.f32.gmra.mrb[0].mxu0 %v763
        %v1173 = vpop.f32.mrb[0].mxu0
        %v1174 = vadd.f32 %v926, %v1173
        %v1175 = vpop.f32.mrb[0].mxu0
        %v1176 = vadd.f32 %v926, %v1175
        %1177 = vmatprep.mubr.f32.mxu0 0.0
        %1178 = vmatmul.mubr.f32.gmra.mrb[0].mxu0 %v764
        %v1179 = vpop.f32.mrb[0].mxu0
        %v1180 = vadd.f32 %v931, %v1179
        %v1181 = vpop.f32.mrb[0].mxu0
        %v1182 = vadd.f32 %v931, %v1181
        %1183 = vmatprep.mubr.f32.mxu0 0.0
        %1184 = vmatmul.mubr.f32.gmra.mrb[0].mxu0 %v765
        %v1185 = vpop.f32.mrb[0].mxu0
        %v1186 = vadd.f32 %v936, %v1185
        %v1187 = vpop.f32.mrb[0].mxu0
        %v1188 = vadd.f32 %v936, %v1187
        %1189 = vmatprep.mubr.f32.mxu0 0.0
        %1190 = vmatmul.mubr.f32.gmra.mrb[0].mxu0 %v766
        %v1191 = vpop.f32.mrb[0].mxu0
        %v1192 = vadd.f32 %v941, %v1191
        %v1193 = vpop.f32.mrb[0].mxu0
        %v1194 = vadd.f32 %v941, %v1193
        %1195 = vmatprep.mubr.f32.mxu0 0.0
        %1196 = vmatmul.mubr.f32.gmra.mrb[0].mxu0 %v767
        %v1197 = vpop.f32.mrb[0].mxu0
        %v1198 = vadd.f32 %v946, %v1197
        %v1199 = vpop.f32.mrb[0].mxu0
        %v1200 = vadd.f32 %v946, %v1199
        %1201 = vmatprep.mubr.f32.mxu0 0.0
        %1202 = vmatmul.mubr.f32.gmra.mrb[0].mxu0 %v768
        %v1203 = vpop.f32.mrb[0].mxu0
        %v1204 = vadd.f32 %v951, %v1203
        %v1205 = vpop.f32.mrb[0].mxu0
        %v1206 = vadd.f32 %v951, %v1205
        %1207 = vmatprep.mubr.f32.mxu0 0.0
        %1208 = vmatmul.mubr.f32.gmra.mrb[0].mxu0 %v769
        %v1209 = vpop.f32.mrb[0].mxu0
        %v1210 = vadd.f32 %v956, %v1209
        %v1211 = vpop.f32.mrb[0].mxu0
        %v1212 = vadd.f32 %v956, %v1211
        %1213 = vmatprep.mubr.f32.mxu0 0.0
        %1214 = vmatmul.mubr.f32.gmra.mrb[0].mxu0 %v770
        %v1215 = vpop.f32.mrb[0].mxu0
        %v1216 = vadd.f32 %v961, %v1215
        %v1217 = vpop.f32.mrb[0].mxu0
        %v1218 = vadd.f32 %v961, %v1217
        %1219 = vdwg.mxu0
        %1220 = vmatprep.subr.mxu0 %v678
        %1221 = vmatpush1.msra.mxu0 %v677
        %1222 = vmatprep.subr.mxu0 %v682
        %1223 = vmatpush1.msra.mxu0 %v681
        %1224 = vmatprep.subr.mxu0 %v686
        %1225 = vmatpush1.msra.mxu0 %v685
        %1226 = vmatprep.subr.mxu0 %v690
        %1227 = vmatpush1.msra.mxu0 %v689
        %1228 = vmatprep.subr.mxu0 %v694
        %1229 = vmatpush1.msra.mxu0 %v693
        %1230 = vmatprep.subr.mxu0 %v698
        %1231 = vmatpush1.msra.mxu0 %v697
        %1232 = vmatprep.subr.mxu0 %v702
        %1233 = vmatpush1.msra.mxu0 %v701
        %1234 = vmatprep.subr.mxu0 %v706
        %1235 = vmatpush1.msra.mxu0 %v705
        %1236 = vmatprep.subr.mxu0 %v710
        %1237 = vmatpush1.msra.mxu0 %v709
        %1238 = vmatprep.subr.mxu0 %v714
        %1239 = vmatpush1.msra.mxu0 %v713
        %1240 = vmatprep.subr.mxu0 %v718
        %1241 = vmatpush1.msra.mxu0 %v717
        %1242 = vmatprep.subr.mxu0 %v722
        %1243 = vmatpush1.msra.mxu0 %v721
        %1244 = vmatprep.subr.mxu0 %v726
        %1245 = vmatpush1.msra.mxu0 %v725
        %1246 = vmatprep.subr.mxu0 %v730
        %1247 = vmatpush1.msra.mxu0 %v729
        %1248 = vmatprep.subr.mxu0 %v734
        %1249 = vmatpush1.msra.mxu0 %v733
        %1250 = vmatprep.subr.mxu0 %v738
        %1251 = vmatpush1.msra.mxu0 %v737
        %1252 = vmatprep.subr.mxu0 0.0
        %1253 = vmatpush1.msra.mxu0 0.0
        %1254 = vmatprep.subr.mxu0 0.0
        %1255 = vmatpush1.msra.mxu0 0.0
        %1256 = vmatprep.subr.mxu0 0.0
        %1257 = vmatpush1.msra.mxu0 0.0
        %1258 = vmatprep.subr.mxu0 0.0
        %1259 = vmatpush1.msra.mxu0 0.0
        %1260 = vmatprep.subr.mxu0 0.0
        %1261 = vmatpush1.msra.mxu0 0.0
        %1262 = vmatprep.subr.mxu0 0.0
        %1263 = vmatpush1.msra.mxu0 0.0
        %1264 = vmatprep.subr.mxu0 0.0
        %1265 = vmatpush1.msra.mxu0 0.0
        %1266 = vmatprep.subr.mxu0 0.0
        %1267 = vmatpush1.msra.mxu0 0.0
        %1268 = vmatprep.subr.mxu0 0.0
        %1269 = vmatpush1.msra.mxu0 0.0
        %1270 = vmatprep.subr.mxu0 0.0
        %1271 = vmatpush1.msra.mxu0 0.0
        %1272 = vmatprep.subr.mxu0 0.0
        %1273 = vmatpush1.msra.mxu0 0.0
        %1274 = vmatprep.subr.mxu0 0.0
        %1275 = vmatpush1.msra.mxu0 0.0
        %1276 = vmatprep.subr.mxu0 0.0
        %1277 = vmatpush1.msra.mxu0 0.0
        %1278 = vmatprep.subr.mxu0 0.0
        %1279 = vmatpush1.msra.mxu0 0.0
        %1280 = vmatprep.subr.mxu0 0.0
        %1281 = vmatpush1.msra.mxu0 0.0
        %1282 = vmatprep.subr.mxu0 0.0
        %1283 = vmatpush1.msra.mxu0 0.0
        %1284 = vmatprep.mubr.f32.mxu0 0.0
        %1285 = vmatmul.mubr.f32.gmra.mrb[0].mxu0 %v739
        %v1286 = vpop.f32.mrb[0].mxu0
        %v1287 = vadd.f32 %v806, %v1286
        %v1288 = vpop.f32.mrb[0].mxu0
        %v1289 = vadd.f32 %v806, %v1288
        %1290 = vmatprep.mubr.f32.mxu0 0.0
        %1291 = vmatmul.mubr.f32.gmra.mrb[0].mxu0 %v740
        %v1292 = vpop.f32.mrb[0].mxu0
        %v1293 = vadd.f32 %v811, %v1292
        %v1294 = vpop.f32.mrb[0].mxu0
        %v1295 = vadd.f32 %v811, %v1294
        %1296 = vmatprep.mubr.f32.mxu0 0.0
        %1297 = vmatmul.mubr.f32.gmra.mrb[0].mxu0 %v741
        %v1298 = vpop.f32.mrb[0].mxu0
        %v1299 = vadd.f32 %v816, %v1298
        %v1300 = vpop.f32.mrb[0].mxu0
        %v1301 = vadd.f32 %v816, %v1300
        %1302 = vmatprep.mubr.f32.mxu0 0.0
        %1303 = vmatmul.mubr.f32.gmra.mrb[0].mxu0 %v742
        %v1304 = vpop.f32.mrb[0].mxu0
        %v1305 = vadd.f32 %v821, %v1304
        %v1306 = vpop.f32.mrb[0].mxu0
        %v1307 = vadd.f32 %v821, %v1306
        %1308 = vmatprep.mubr.f32.mxu0 0.0
        %1309 = vmatmul.mubr.f32.gmra.mrb[0].mxu0 %v743
        %v1310 = vpop.f32.mrb[0].mxu0
        %v1311 = vadd.f32 %v826, %v1310
        %v1312 = vpop.f32.mrb[0].mxu0
        %v1313 = vadd.f32 %v826, %v1312
        %1314 = vmatprep.mubr.f32.mxu0 0.0
        %1315 = vmatmul.mubr.f32.gmra.mrb[0].mxu0 %v744
        %v1316 = vpop.f32.mrb[0].mxu0
        %v1317 = vadd.f32 %v831, %v1316
        %v1318 = vpop.f32.mrb[0].mxu0
        %v1319 = vadd.f32 %v831, %v1318
        %1320 = vmatprep.mubr.f32.mxu0 0.0
        %1321 = vmatmul.mubr.f32.gmra.mrb[0].mxu0 %v745
        %v1322 = vpop.f32.mrb[0].mxu0
        %v1323 = vadd.f32 %v836, %v1322
        %v1324 = vpop.f32.mrb[0].mxu0
        %v1325 = vadd.f32 %v836, %v1324
        %1326 = vmatprep.mubr.f32.mxu0 0.0
        %1327 = vmatmul.mubr.f32.gmra.mrb[0].mxu0 %v746
        %v1328 = vpop.f32.mrb[0].mxu0
        %v1329 = vadd.f32 %v841, %v1328
        %v1330 = vpop.f32.mrb[0].mxu0
        %v1331 = vadd.f32 %v841, %v1330
        %1332 = vmatprep.mubr.f32.mxu0 0.0
        %1333 = vmatmul.mubr.f32.gmra.mrb[0].mxu0 %v747
        %v1334 = vpop.f32.mrb[0].mxu0
        %v1335 = vadd.f32 %v846, %v1334
        %v1336 = vpop.f32.mrb[0].mxu0
        %v1337 = vadd.f32 %v846, %v1336
        %1338 = vmatprep.mubr.f32.mxu0 0.0
        %1339 = vmatmul.mubr.f32.gmra.mrb[0].mxu0 %v748
        %v1340 = vpop.f32.mrb[0].mxu0
        %v1341 = vadd.f32 %v851, %v1340
        %v1342 = vpop.f32.mrb[0].mxu0
        %v1343 = vadd.f32 %v851, %v1342
        %1344 = vmatprep.mubr.f32.mxu0 0.0
        %1345 = vmatmul.mubr.f32.gmra.mrb[0].mxu0 %v749
        %v1346 = vpop.f32.mrb[0].mxu0
        %v1347 = vadd.f32 %v856, %v1346
        %v1348 = vpop.f32.mrb[0].mxu0
        %v1349 = vadd.f32 %v856, %v1348
        %1350 = vmatprep.mubr.f32.mxu0 0.0
        %1351 = vmatmul.mubr.f32.gmra.mrb[0].mxu0 %v750
        %v1352 = vpop.f32.mrb[0].mxu0
        %v1353 = vadd.f32 %v861, %v1352
        %v1354 = vpop.f32.mrb[0].mxu0
        %v1355 = vadd.f32 %v861, %v1354
        %1356 = vmatprep.mubr.f32.mxu0 0.0
        %1357 = vmatmul.mubr.f32.gmra.mrb[0].mxu0 %v751
        %v1358 = vpop.f32.mrb[0].mxu0
        %v1359 = vadd.f32 %v866, %v1358
        %v1360 = vpop.f32.mrb[0].mxu0
        %v1361 = vadd.f32 %v866, %v1360
        %1362 = vmatprep.mubr.f32.mxu0 0.0
        %1363 = vmatmul.mubr.f32.gmra.mrb[0].mxu0 %v752
        %v1364 = vpop.f32.mrb[0].mxu0
        %v1365 = vadd.f32 %v871, %v1364
        %v1366 = vpop.f32.mrb[0].mxu0
        %v1367 = vadd.f32 %v871, %v1366
        %1368 = vmatprep.mubr.f32.mxu0 0.0
        %1369 = vmatmul.mubr.f32.gmra.mrb[0].mxu0 %v753
        %v1370 = vpop.f32.mrb[0].mxu0
        %v1371 = vadd.f32 %v876, %v1370
        %v1372 = vpop.f32.mrb[0].mxu0
        %v1373 = vadd.f32 %v876, %v1372
        %1374 = vmatprep.mubr.f32.mxu0 0.0
        %1375 = vmatmul.mubr.f32.gmra.mrb[0].mxu0 %v754
        %v1376 = vpop.f32.mrb[0].mxu0
        %v1377 = vadd.f32 %v881, %v1376
        %v1378 = vpop.f32.mrb[0].mxu0
        %v1379 = vadd.f32 %v881, %v1378
        %1380 = vmatprep.mubr.f32.mxu0 0.0
        %1381 = vmatmul.mubr.f32.gmra.mrb[0].mxu0 %v755
        %v1382 = vpop.f32.mrb[0].mxu0
        %v1383 = vadd.f32 %v886, %v1382
        %v1384 = vpop.f32.mrb[0].mxu0
        %v1385 = vadd.f32 %v886, %v1384
        %1386 = vmatprep.mubr.f32.mxu0 0.0
        %1387 = vmatmul.mubr.f32.gmra.mrb[0].mxu0 %v756
        %v1388 = vpop.f32.mrb[0].mxu0
        %v1389 = vadd.f32 %v891, %v1388
        %v1390 = vpop.f32.mrb[0].mxu0
        %v1391 = vadd.f32 %v891, %v1390
        %1392 = vmatprep.mubr.f32.mxu0 0.0
        %1393 = vmatmul.mubr.f32.gmra.mrb[0].mxu0 %v757
        %v1394 = vpop.f32.mrb[0].mxu0
        %v1395 = vadd.f32 %v896, %v1394
        %v1396 = vpop.f32.mrb[0].mxu0
        %v1397 = vadd.f32 %v896, %v1396
        %1398 = vmatprep.mubr.f32.mxu0 0.0
        %1399 = vmatmul.mubr.f32.gmra.mrb[0].mxu0 %v758
        %v1400 = vpop.f32.mrb[0].mxu0
        %v1401 = vadd.f32 %v901, %v1400
        %v1402 = vpop.f32.mrb[0].mxu0
        %v1403 = vadd.f32 %v901, %v1402
        %1404 = vmatprep.mubr.f32.mxu0 0.0
        %1405 = vmatmul.mubr.f32.gmra.mrb[0].mxu0 %v759
        %v1406 = vpop.f32.mrb[0].mxu0
        %v1407 = vadd.f32 %v906, %v1406
        %v1408 = vpop.f32.mrb[0].mxu0
        %v1409 = vadd.f32 %v906, %v1408
        %1410 = vmatprep.mubr.f32.mxu0 0.0
        %1411 = vmatmul.mubr.f32.gmra.mrb[0].mxu0 %v760
        %v1412 = vpop.f32.mrb[0].mxu0
        %v1413 = vadd.f32 %v911, %v1412
        %v1414 = vpop.f32.mrb[0].mxu0
        %v1415 = vadd.f32 %v911, %v1414
        %1416 = vmatprep.mubr.f32.mxu0 0.0
        %1417 = vmatmul.mubr.f32.gmra.mrb[0].mxu0 %v761
        %v1418 = vpop.f32.mrb[0].mxu0
        %v1419 = vadd.f32 %v916, %v1418
        %v1420 = vpop.f32.mrb[0].mxu0
        %v1421 = vadd.f32 %v916, %v1420
        %1422 = vmatprep.mubr.f32.mxu0 0.0
        %1423 = vmatmul.mubr.f32.gmra.mrb[0].mxu0 %v762
        %v1424 = vpop.f32.mrb[0].mxu0
        %v1425 = vadd.f32 %v921, %v1424
        %v1426 = vpop.f32.mrb[0].mxu0
        %v1427 = vadd.f32 %v921, %v1426
        %1428 = vmatprep.mubr.f32.mxu0 0.0
        %1429 = vmatmul.mubr.f32.gmra.mrb[0].mxu0 %v763
        %v1430 = vpop.f32.mrb[0].mxu0
        %v1431 = vadd.f32 %v926, %v1430
        %v1432 = vpop.f32.mrb[0].mxu0
        %v1433 = vadd.f32 %v926, %v1432
        %1434 = vmatprep.mubr.f32.mxu0 0.0
        %1435 = vmatmul.mubr.f32.gmra.mrb[0].mxu0 %v764
        %v1436 = vpop.f32.mrb[0].mxu0
        %v1437 = vadd.f32 %v931, %v1436
        %v1438 = vpop.f32.mrb[0].mxu0
        %v1439 = vadd.f32 %v931, %v1438
        %1440 = vmatprep.mubr.f32.mxu0 0.0
        %1441 = vmatmul.mubr.f32.gmra.mrb[0].mxu0 %v765
        %v1442 = vpop.f32.mrb[0].mxu0
        %v1443 = vadd.f32 %v936, %v1442
        %v1444 = vpop.f32.mrb[0].mxu0
        %v1445 = vadd.f32 %v936, %v1444
        %1446 = vmatprep.mubr.f32.mxu0 0.0
        %1447 = vmatmul.mubr.f32.gmra.mrb[0].mxu0 %v766
        %v1448 = vpop.f32.mrb[0].mxu0
        %v1449 = vadd.f32 %v941, %v1448
        %v1450 = vpop.f32.mrb[0].mxu0
        %v1451 = vadd.f32 %v941, %v1450
        %1452 = vmatprep.mubr.f32.mxu0 0.0
        %1453 = vmatmul.mubr.f32.gmra.mrb[0].mxu0 %v767
        %v1454 = vpop.f32.mrb[0].mxu0
        %v1455 = vadd.f32 %v946, %v1454
        %v1456 = vpop.f32.mrb[0].mxu0
        %v1457 = vadd.f32 %v946, %v1456
        %1458 = vmatprep.mubr.f32.mxu0 0.0
        %1459 = vmatmul.mubr.f32.gmra.mrb[0].mxu0 %v768
        %v1460 = vpop.f32.mrb[0].mxu0
        %v1461 = vadd.f32 %v951, %v1460
        %v1462 = vpop.f32.mrb[0].mxu0
        %v1463 = vadd.f32 %v951, %v1462
        %1464 = vmatprep.mubr.f32.mxu0 0.0
        %1465 = vmatmul.mubr.f32.gmra.mrb[0].mxu0 %v769
        %v1466 = vpop.f32.mrb[0].mxu0
        %v1467 = vadd.f32 %v956, %v1466
        %v1468 = vpop.f32.mrb[0].mxu0
        %v1469 = vadd.f32 %v956, %v1468
        %1470 = vmatprep.mubr.f32.mxu0 0.0
        %1471 = vmatmul.mubr.f32.gmra.mrb[0].mxu0 %v770
        %v1472 = vpop.f32.mrb[0].mxu0
        %v1473 = vadd.f32 %v961, %v1472
        %v1474 = vpop.f32.mrb[0].mxu0
        %v1475 = vadd.f32 %v961, %v1474
        %1476 = vdwg.mxu0
        %v1477 = vmax.f32 %v1030, 0.0
        %v1478 = vmax.f32 %v1032, 0.0
        %v1479 = vmax.f32 %v1287, 0.0
        %v1480 = vmax.f32 %v1289, 0.0
        %v1481 = vmax.f32 %v1036, 0.0
        %v1482 = vmax.f32 %v1038, 0.0
        %v1483 = vmax.f32 %v1293, 0.0
        %v1484 = vmax.f32 %v1295, 0.0
        %v1485 = vmax.f32 %v1042, 0.0
        %v1486 = vmax.f32 %v1044, 0.0
        %v1487 = vmax.f32 %v1299, 0.0
        %v1488 = vmax.f32 %v1301, 0.0
        %v1489 = vmax.f32 %v1048, 0.0
        %v1490 = vmax.f32 %v1050, 0.0
        %v1491 = vmax.f32 %v1305, 0.0
        %v1492 = vmax.f32 %v1307, 0.0
        %v1493 = vmax.f32 %v1054, 0.0
        %v1494 = vmax.f32 %v1056, 0.0
        %v1495 = vmax.f32 %v1311, 0.0
        %v1496 = vmax.f32 %v1313, 0.0
        %v1497 = vmax.f32 %v1060, 0.0
        %v1498 = vmax.f32 %v1062, 0.0
        %v1499 = vmax.f32 %v1317, 0.0
        %v1500 = vmax.f32 %v1319, 0.0
        %v1501 = vmax.f32 %v1066, 0.0
        %v1502 = vmax.f32 %v1068, 0.0
        %v1503 = vmax.f32 %v1323, 0.0
        %v1504 = vmax.f32 %v1325, 0.0
        %v1505 = vmax.f32 %v1072, 0.0
        %v1506 = vmax.f32 %v1074, 0.0
        %v1507 = vmax.f32 %v1329, 0.0
        %v1508 = vmax.f32 %v1331, 0.0
        %v1509 = vmax.f32 %v1078, 0.0
        %v1510 = vmax.f32 %v1080, 0.0
        %v1511 = vmax.f32 %v1335, 0.0
        %v1512 = vmax.f32 %v1337, 0.0
        %v1513 = vmax.f32 %v1084, 0.0
        %v1514 = vmax.f32 %v1086, 0.0
        %v1515 = vmax.f32 %v1341, 0.0
        %v1516 = vmax.f32 %v1343, 0.0
        %v1517 = vmax.f32 %v1090, 0.0
        %v1518 = vmax.f32 %v1092, 0.0
        %v1519 = vmax.f32 %v1347, 0.0
        %v1520 = vmax.f32 %v1349, 0.0
        %v1521 = vmax.f32 %v1096, 0.0
        %v1522 = vmax.f32 %v1098, 0.0
        %v1523 = vmax.f32 %v1353, 0.0
        %v1524 = vmax.f32 %v1355, 0.0
        %v1525 = vmax.f32 %v1102, 0.0
        %v1526 = vmax.f32 %v1104, 0.0
        %v1527 = vmax.f32 %v1359, 0.0
        %v1528 = vmax.f32 %v1361, 0.0
        %v1529 = vmax.f32 %v1108, 0.0
        %v1530 = vmax.f32 %v1110, 0.0
        %v1531 = vmax.f32 %v1365, 0.0
        %v1532 = vmax.f32 %v1367, 0.0
        %v1533 = vmax.f32 %v1114, 0.0
        %v1534 = vmax.f32 %v1116, 0.0
        %v1535 = vmax.f32 %v1371, 0.0
        %v1536 = vmax.f32 %v1373, 0.0
        %v1537 = vmax.f32 %v1120, 0.0
        %v1538 = vmax.f32 %v1122, 0.0
        %v1539 = vmax.f32 %v1377, 0.0
        %v1540 = vmax.f32 %v1379, 0.0
        %v1541 = vmax.f32 %v1126, 0.0
        %v1542 = vmax.f32 %v1128, 0.0
        %v1543 = vmax.f32 %v1383, 0.0
        %v1544 = vmax.f32 %v1385, 0.0
        %v1545 = vmax.f32 %v1132, 0.0
        %v1546 = vmax.f32 %v1134, 0.0
        %v1547 = vmax.f32 %v1389, 0.0
        %v1548 = vmax.f32 %v1391, 0.0
        %v1549 = vmax.f32 %v1138, 0.0
        %v1550 = vmax.f32 %v1140, 0.0
        %v1551 = vmax.f32 %v1395, 0.0
        %v1552 = vmax.f32 %v1397, 0.0
        %v1553 = vmax.f32 %v1144, 0.0
        %v1554 = vmax.f32 %v1146, 0.0
        %v1555 = vmax.f32 %v1401, 0.0
        %v1556 = vmax.f32 %v1403, 0.0
        %v1557 = vmax.f32 %v1150, 0.0
        %v1558 = vmax.f32 %v1152, 0.0
        %v1559 = vmax.f32 %v1407, 0.0
        %v1560 = vmax.f32 %v1409, 0.0
        %v1561 = vmax.f32 %v1156, 0.0
        %v1562 = vmax.f32 %v1158, 0.0
        %v1563 = vmax.f32 %v1413, 0.0
        %v1564 = vmax.f32 %v1415, 0.0
        %v1565 = vmax.f32 %v1162, 0.0
        %v1566 = vmax.f32 %v1164, 0.0
        %v1567 = vmax.f32 %v1419, 0.0
        %v1568 = vmax.f32 %v1421, 0.0
        %v1569 = vmax.f32 %v1168, 0.0
        %v1570 = vmax.f32 %v1170, 0.0
        %v1571 = vmax.f32 %v1425, 0.0
        %v1572 = vmax.f32 %v1427, 0.0
        %v1573 = vmax.f32 %v1174, 0.0
        %v1574 = vmax.f32 %v1176, 0.0
        %v1575 = vmax.f32 %v1431, 0.0
        %v1576 = vmax.f32 %v1433, 0.0
        %v1577 = vmax.f32 %v1180, 0.0
        %v1578 = vmax.f32 %v1182, 0.0
        %v1579 = vmax.f32 %v1437, 0.0
        %v1580 = vmax.f32 %v1439, 0.0
        %v1581 = vmax.f32 %v1186, 0.0
        %v1582 = vmax.f32 %v1188, 0.0
        %v1583 = vmax.f32 %v1443, 0.0
        %v1584 = vmax.f32 %v1445, 0.0
        %v1585 = vmax.f32 %v1192, 0.0
        %v1586 = vmax.f32 %v1194, 0.0
        %v1587 = vmax.f32 %v1449, 0.0
        %v1588 = vmax.f32 %v1451, 0.0
        %v1589 = vmax.f32 %v1198, 0.0
        %v1590 = vmax.f32 %v1200, 0.0
        %v1591 = vmax.f32 %v1455, 0.0
        %v1592 = vmax.f32 %v1457, 0.0
        %v1593 = vmax.f32 %v1204, 0.0
        %v1594 = vmax.f32 %v1206, 0.0
        %v1595 = vmax.f32 %v1461, 0.0
        %v1596 = vmax.f32 %v1463, 0.0
        %v1597 = vmax.f32 %v1210, 0.0
        %v1598 = vmax.f32 %v1212, 0.0
        %v1599 = vmax.f32 %v1467, 0.0
        %v1600 = vmax.f32 %v1469, 0.0
        %v1601 = vmax.f32 %v1216, 0.0
        %v1602 = vmax.f32 %v1218, 0.0
        %v1603 = vmax.f32 %v1473, 0.0
        %v1604 = vmax.f32 %v1475, 0.0
        %v1605 = vld [vmem:[%s5] sm:$0xff]
        %v1606 = vld [vmem:[%s5 + $0x8] sm:$0xff]
        %v1607 = vld [vmem:[%s5 + $0x10] sm:$0xff]
        %v1608 = vld [vmem:[%s5 + $0x18] sm:$0xff]
        %v1609 = vld [vmem:[%s5 + $0x20] sm:$0xff]
        %v1610 = vld [vmem:[%s5 + $0x28] sm:$0xff]
        %v1611 = vld [vmem:[%s5 + $0x30] sm:$0xff]
        %v1612 = vld [vmem:[%s5 + $0x38] sm:$0xff]
        %v1613 = vld [vmem:[%s5 + $0x40] sm:$0xff]
        %v1614 = vld [vmem:[%s5 + $0x48] sm:$0xff]
        %v1615 = vld [vmem:[%s5 + $0x50] sm:$0xff]
        %v1616 = vld [vmem:[%s5 + $0x58] sm:$0xff]
        %v1617 = vld [vmem:[%s5 + $0x60] sm:$0xff]
        %v1618 = vld [vmem:[%s5 + $0x68] sm:$0xff]
        %v1619 = vld [vmem:[%s5 + $0x70] sm:$0xff]
        %v1620 = vld [vmem:[%s5 + $0x78] sm:$0xff]
        %v1621 = vld [vmem:[%s5 + $0x80] sm:$0xff]
        %v1622 = vld [vmem:[%s5 + $0x88] sm:$0xff]
        %v1623 = vld [vmem:[%s5 + $0x90] sm:$0xff]
        %v1624 = vld [vmem:[%s5 + $0x98] sm:$0xff]
        %v1625 = vld [vmem:[%s5 + $0xa0] sm:$0xff]
        %v1626 = vld [vmem:[%s5 + $0xa8] sm:$0xff]
        %v1627 = vld [vmem:[%s5 + $0xb0] sm:$0xff]
        %v1628 = vld [vmem:[%s5 + $0xb8] sm:$0xff]
        %v1629 = vld [vmem:[%s5 + $0xc0] sm:$0xff]
        %v1630 = vld [vmem:[%s5 + $0xc8] sm:$0xff]
        %v1631 = vld [vmem:[%s5 + $0xd0] sm:$0xff]
        %v1632 = vld [vmem:[%s5 + $0xd8] sm:$0xff]
        %v1633 = vld [vmem:[%s5 + $0xe0] sm:$0xff]
        %v1634 = vld [vmem:[%s5 + $0xe8] sm:$0xff]
        %v1635 = vld [vmem:[%s5 + $0xf0] sm:$0xff]
        %v1636 = vld [vmem:[%s5 + $0xf8] sm:$0xff]
        %v1637 = vld [vmem:[%s6] sm:$0xff]
        %v1638 = vld [vmem:[%s6 + $0x8] sm:$0xff]
        %v1639 = vld [vmem:[%s6 + $0x10] sm:$0xff]
        %v1640 = vld [vmem:[%s6 + $0x18] sm:$0xff]
        %v1641 = vld [vmem:[%s6 + $0x20] sm:$0xff]
        %v1642 = vld [vmem:[%s6 + $0x28] sm:$0xff]
        %v1643 = vld [vmem:[%s6 + $0x30] sm:$0xff]
        %v1644 = vld [vmem:[%s6 + $0x38] sm:$0xff]
        %v1645 = vld [vmem:[%s6 + $0x40] sm:$0xff]
        %v1646 = vld [vmem:[%s6 + $0x48] sm:$0xff]
        %v1647 = vld [vmem:[%s6 + $0x50] sm:$0xff]
        %v1648 = vld [vmem:[%s6 + $0x58] sm:$0xff]
        %v1649 = vld [vmem:[%s6 + $0x60] sm:$0xff]
        %v1650 = vld [vmem:[%s6 + $0x68] sm:$0xff]
        %v1651 = vld [vmem:[%s6 + $0x70] sm:$0xff]
        %v1652 = vld [vmem:[%s6 + $0x78] sm:$0xff]
        %1654 = vset.pattern.permute.xlu0 0
        %1655 = vperm.xlu0 %1654, %v1637
        %v1656 = vpop.permute.xlu0 %1655
        %1659 = vset.pattern.permute.xlu0 0
        %1660 = vperm.xlu0 %1659, %v1638
        %v1661 = vpop.permute.xlu0 %1660
        %1664 = vset.pattern.permute.xlu0 0
        %1665 = vperm.xlu0 %1664, %v1639
        %v1666 = vpop.permute.xlu0 %1665
        %1669 = vset.pattern.permute.xlu0 0
        %1670 = vperm.xlu0 %1669, %v1640
        %v1671 = vpop.permute.xlu0 %1670
        %1674 = vset.pattern.permute.xlu0 0
        %1675 = vperm.xlu0 %1674, %v1641
        %v1676 = vpop.permute.xlu0 %1675
        %1679 = vset.pattern.permute.xlu0 0
        %1680 = vperm.xlu0 %1679, %v1642
        %v1681 = vpop.permute.xlu0 %1680
        %1684 = vset.pattern.permute.xlu0 0
        %1685 = vperm.xlu0 %1684, %v1643
        %v1686 = vpop.permute.xlu0 %1685
        %1689 = vset.pattern.permute.xlu0 0
        %1690 = vperm.xlu0 %1689, %v1644
        %v1691 = vpop.permute.xlu0 %1690
        %1694 = vset.pattern.permute.xlu0 0
        %1695 = vperm.xlu0 %1694, %v1645
        %v1696 = vpop.permute.xlu0 %1695
        %1699 = vset.pattern.permute.xlu0 0
        %1700 = vperm.xlu0 %1699, %v1646
        %v1701 = vpop.permute.xlu0 %1700
        %1704 = vset.pattern.permute.xlu0 0
        %1705 = vperm.xlu0 %1704, %v1647
        %v1706 = vpop.permute.xlu0 %1705
        %1709 = vset.pattern.permute.xlu0 0
        %1710 = vperm.xlu0 %1709, %v1648
        %v1711 = vpop.permute.xlu0 %1710
        %1714 = vset.pattern.permute.xlu0 0
        %1715 = vperm.xlu0 %1714, %v1649
        %v1716 = vpop.permute.xlu0 %1715
        %1719 = vset.pattern.permute.xlu0 0
        %1720 = vperm.xlu0 %1719, %v1650
        %v1721 = vpop.permute.xlu0 %1720
        %1724 = vset.pattern.permute.xlu0 0
        %1725 = vperm.xlu0 %1724, %v1651
        %v1726 = vpop.permute.xlu0 %1725
        %1729 = vset.pattern.permute.xlu0 0
        %1730 = vperm.xlu0 %1729, %v1652
        %v1731 = vpop.permute.xlu0 %1730
        %1733 = vmatprep.subr.mxu0 %v1478
        %1734 = vmatpush1.msra.mxu0 %v1477
        %1735 = vmatprep.subr.mxu0 %v1482
        %1736 = vmatpush1.msra.mxu0 %v1481
        %1737 = vmatprep.subr.mxu0 %v1486
        %1738 = vmatpush1.msra.mxu0 %v1485
        %1739 = vmatprep.subr.mxu0 %v1490
        %1740 = vmatpush1.msra.mxu0 %v1489
        %1741 = vmatprep.subr.mxu0 %v1494
        %1742 = vmatpush1.msra.mxu0 %v1493
        %1743 = vmatprep.subr.mxu0 %v1498
        %1744 = vmatpush1.msra.mxu0 %v1497
        %1745 = vmatprep.subr.mxu0 %v1502
        %1746 = vmatpush1.msra.mxu0 %v1501
        %1747 = vmatprep.subr.mxu0 %v1506
        %1748 = vmatpush1.msra.mxu0 %v1505
        %1749 = vmatprep.subr.mxu0 %v1510
        %1750 = vmatpush1.msra.mxu0 %v1509
        %1751 = vmatprep.subr.mxu0 %v1514
        %1752 = vmatpush1.msra.mxu0 %v1513
        %1753 = vmatprep.subr.mxu0 %v1518
        %1754 = vmatpush1.msra.mxu0 %v1517
        %1755 = vmatprep.subr.mxu0 %v1522
        %1756 = vmatpush1.msra.mxu0 %v1521
        %1757 = vmatprep.subr.mxu0 %v1526
        %1758 = vmatpush1.msra.mxu0 %v1525
        %1759 = vmatprep.subr.mxu0 %v1530
        %1760 = vmatpush1.msra.mxu0 %v1529
        %1761 = vmatprep.subr.mxu0 %v1534
        %1762 = vmatpush1.msra.mxu0 %v1533
        %1763 = vmatprep.subr.mxu0 %v1538
        %1764 = vmatpush1.msra.mxu0 %v1537
        %1765 = vmatprep.subr.mxu0 %v1542
        %1766 = vmatpush1.msra.mxu0 %v1541
        %1767 = vmatprep.subr.mxu0 %v1546
        %1768 = vmatpush1.msra.mxu0 %v1545
        %1769 = vmatprep.subr.mxu0 %v1550
        %1770 = vmatpush1.msra.mxu0 %v1549
        %1771 = vmatprep.subr.mxu0 %v1554
        %1772 = vmatpush1.msra.mxu0 %v1553
        %1773 = vmatprep.subr.mxu0 %v1558
        %1774 = vmatpush1.msra.mxu0 %v1557
        %1775 = vmatprep.subr.mxu0 %v1562
        %1776 = vmatpush1.msra.mxu0 %v1561
        %1777 = vmatprep.subr.mxu0 %v1566
        %1778 = vmatpush1.msra.mxu0 %v1565
        %1779 = vmatprep.subr.mxu0 %v1570
        %1780 = vmatpush1.msra.mxu0 %v1569
        %1781 = vmatprep.subr.mxu0 %v1574
        %1782 = vmatpush1.msra.mxu0 %v1573
        %1783 = vmatprep.subr.mxu0 %v1578
        %1784 = vmatpush1.msra.mxu0 %v1577
        %1785 = vmatprep.subr.mxu0 %v1582
        %1786 = vmatpush1.msra.mxu0 %v1581
        %1787 = vmatprep.subr.mxu0 %v1586
        %1788 = vmatpush1.msra.mxu0 %v1585
        %1789 = vmatprep.subr.mxu0 %v1590
        %1790 = vmatpush1.msra.mxu0 %v1589
        %1791 = vmatprep.subr.mxu0 %v1594
        %1792 = vmatpush1.msra.mxu0 %v1593
        %1793 = vmatprep.subr.mxu0 %v1598
        %1794 = vmatpush1.msra.mxu0 %v1597
        %1795 = vmatprep.subr.mxu0 %v1602
        %1796 = vmatpush1.msra.mxu0 %v1601
        %1797 = vmatprep.mubr.f32.mxu0 %v1606
        %1798 = vmatmul.mubr.f32.gmra.mrb[0].mxu0 %v1605
        %v1799 = vpop.f32.mrb[0].mxu0
        %v1800 = vadd.f32 %v1656, %v1799
        %v1801 = vpop.f32.mrb[0].mxu0
        %v1802 = vadd.f32 %v1656, %v1801
        %1803 = vmatprep.mubr.f32.mxu0 %v1608
        %1804 = vmatmul.mubr.f32.gmra.mrb[0].mxu0 %v1607
        %v1805 = vpop.f32.mrb[0].mxu0
        %v1806 = vadd.f32 %v1661, %v1805
        %v1807 = vpop.f32.mrb[0].mxu0
        %v1808 = vadd.f32 %v1661, %v1807
        %1809 = vmatprep.mubr.f32.mxu0 %v1610
        %1810 = vmatmul.mubr.f32.gmra.mrb[0].mxu0 %v1609
        %v1811 = vpop.f32.mrb[0].mxu0
        %v1812 = vadd.f32 %v1666, %v1811
        %v1813 = vpop.f32.mrb[0].mxu0
        %v1814 = vadd.f32 %v1666, %v1813
        %1815 = vmatprep.mubr.f32.mxu0 %v1612
        %1816 = vmatmul.mubr.f32.gmra.mrb[0].mxu0 %v1611
        %v1817 = vpop.f32.mrb[0].mxu0
        %v1818 = vadd.f32 %v1671, %v1817
        %v1819 = vpop.f32.mrb[0].mxu0
        %v1820 = vadd.f32 %v1671, %v1819
        %1821 = vmatprep.mubr.f32.mxu0 %v1614
        %1822 = vmatmul.mubr.f32.gmra.mrb[0].mxu0 %v1613
        %v1823 = vpop.f32.mrb[0].mxu0
        %v1824 = vadd.f32 %v1676, %v1823
        %v1825 = vpop.f32.mrb[0].mxu0
        %v1826 = vadd.f32 %v1676, %v1825
        %1827 = vmatprep.mubr.f32.mxu0 %v1616
        %1828 = vmatmul.mubr.f32.gmra.mrb[0].mxu0 %v1615
        %v1829 = vpop.f32.mrb[0].mxu0
        %v1830 = vadd.f32 %v1681, %v1829
        %v1831 = vpop.f32.mrb[0].mxu0
        %v1832 = vadd.f32 %v1681, %v1831
        %1833 = vmatprep.mubr.f32.mxu0 %v1618
        %1834 = vmatmul.mubr.f32.gmra.mrb[0].mxu0 %v1617
        %v1835 = vpop.f32.mrb[0].mxu0
        %v1836 = vadd.f32 %v1686, %v1835
        %v1837 = vpop.f32.mrb[0].mxu0
        %v1838 = vadd.f32 %v1686, %v1837
        %1839 = vmatprep.mubr.f32.mxu0 %v1620
        %1840 = vmatmul.mubr.f32.gmra.mrb[0].mxu0 %v1619
        %v1841 = vpop.f32.mrb[0].mxu0
        %v1842 = vadd.f32 %v1691, %v1841
        %v1843 = vpop.f32.mrb[0].mxu0
        %v1844 = vadd.f32 %v1691, %v1843
        %1845 = vmatprep.mubr.f32.mxu0 %v1622
        %1846 = vmatmul.mubr.f32.gmra.mrb[0].mxu0 %v1621
        %v1847 = vpop.f32.mrb[0].mxu0
        %v1848 = vadd.f32 %v1696, %v1847
        %v1849 = vpop.f32.mrb[0].mxu0
        %v1850 = vadd.f32 %v1696, %v1849
        %1851 = vmatprep.mubr.f32.mxu0 %v1624
        %1852 = vmatmul.mubr.f32.gmra.mrb[0].mxu0 %v1623
        %v1853 = vpop.f32.mrb[0].mxu0
        %v1854 = vadd.f32 %v1701, %v1853
        %v1855 = vpop.f32.mrb[0].mxu0
        %v1856 = vadd.f32 %v1701, %v1855
        %1857 = vmatprep.mubr.f32.mxu0 %v1626
        %1858 = vmatmul.mubr.f32.gmra.mrb[0].mxu0 %v1625
        %v1859 = vpop.f32.mrb[0].mxu0
        %v1860 = vadd.f32 %v1706, %v1859
        %v1861 = vpop.f32.mrb[0].mxu0
        %v1862 = vadd.f32 %v1706, %v1861
        %1863 = vmatprep.mubr.f32.mxu0 %v1628
        %1864 = vmatmul.mubr.f32.gmra.mrb[0].mxu0 %v1627
        %v1865 = vpop.f32.mrb[0].mxu0
        %v1866 = vadd.f32 %v1711, %v1865
        %v1867 = vpop.f32.mrb[0].mxu0
        %v1868 = vadd.f32 %v1711, %v1867
        %1869 = vmatprep.mubr.f32.mxu0 %v1630
        %1870 = vmatmul.mubr.f32.gmra.mrb[0].mxu0 %v1629
        %v1871 = vpop.f32.mrb[0].mxu0
        %v1872 = vadd.f32 %v1716, %v1871
        %v1873 = vpop.f32.mrb[0].mxu0
        %v1874 = vadd.f32 %v1716, %v1873
        %1875 = vmatprep.mubr.f32.mxu0 %v1632
        %1876 = vmatmul.mubr.f32.gmra.mrb[0].mxu0 %v1631
        %v1877 = vpop.f32.mrb[0].mxu0
        %v1878 = vadd.f32 %v1721, %v1877
        %v1879 = vpop.f32.mrb[0].mxu0
        %v1880 = vadd.f32 %v1721, %v1879
        %1881 = vmatprep.mubr.f32.mxu0 %v1634
        %1882 = vmatmul.mubr.f32.gmra.mrb[0].mxu0 %v1633
        %v1883 = vpop.f32.mrb[0].mxu0
        %v1884 = vadd.f32 %v1726, %v1883
        %v1885 = vpop.f32.mrb[0].mxu0
        %v1886 = vadd.f32 %v1726, %v1885
        %1887 = vmatprep.mubr.f32.mxu0 %v1636
        %1888 = vmatmul.mubr.f32.gmra.mrb[0].mxu0 %v1635
        %v1889 = vpop.f32.mrb[0].mxu0
        %v1890 = vadd.f32 %v1731, %v1889
        %v1891 = vpop.f32.mrb[0].mxu0
        %v1892 = vadd.f32 %v1731, %v1891
        %1893 = vdwg.mxu0
        %1894 = vmatprep.subr.mxu0 %v1480
        %1895 = vmatpush1.msra.mxu0 %v1479
        %1896 = vmatprep.subr.mxu0 %v1484
        %1897 = vmatpush1.msra.mxu0 %v1483
        %1898 = vmatprep.subr.mxu0 %v1488
        %1899 = vmatpush1.msra.mxu0 %v1487
        %1900 = vmatprep.subr.mxu0 %v1492
        %1901 = vmatpush1.msra.mxu0 %v1491
        %1902 = vmatprep.subr.mxu0 %v1496
        %1903 = vmatpush1.msra.mxu0 %v1495
        %1904 = vmatprep.subr.mxu0 %v1500
        %1905 = vmatpush1.msra.mxu0 %v1499
        %1906 = vmatprep.subr.mxu0 %v1504
        %1907 = vmatpush1.msra.mxu0 %v1503
        %1908 = vmatprep.subr.mxu0 %v1508
        %1909 = vmatpush1.msra.mxu0 %v1507
        %1910 = vmatprep.subr.mxu0 %v1512
        %1911 = vmatpush1.msra.mxu0 %v1511
        %1912 = vmatprep.subr.mxu0 %v1516
        %1913 = vmatpush1.msra.mxu0 %v1515
        %1914 = vmatprep.subr.mxu0 %v1520
        %1915 = vmatpush1.msra.mxu0 %v1519
        %1916 = vmatprep.subr.mxu0 %v1524
        %1917 = vmatpush1.msra.mxu0 %v1523
        %1918 = vmatprep.subr.mxu0 %v1528
        %1919 = vmatpush1.msra.mxu0 %v1527
        %1920 = vmatprep.subr.mxu0 %v1532
        %1921 = vmatpush1.msra.mxu0 %v1531
        %1922 = vmatprep.subr.mxu0 %v1536
        %1923 = vmatpush1.msra.mxu0 %v1535
        %1924 = vmatprep.subr.mxu0 %v1540
        %1925 = vmatpush1.msra.mxu0 %v1539
        %1926 = vmatprep.subr.mxu0 %v1544
        %1927 = vmatpush1.msra.mxu0 %v1543
        %1928 = vmatprep.subr.mxu0 %v1548
        %1929 = vmatpush1.msra.mxu0 %v1547
        %1930 = vmatprep.subr.mxu0 %v1552
        %1931 = vmatpush1.msra.mxu0 %v1551
        %1932 = vmatprep.subr.mxu0 %v1556
        %1933 = vmatpush1.msra.mxu0 %v1555
        %1934 = vmatprep.subr.mxu0 %v1560
        %1935 = vmatpush1.msra.mxu0 %v1559
        %1936 = vmatprep.subr.mxu0 %v1564
        %1937 = vmatpush1.msra.mxu0 %v1563
        %1938 = vmatprep.subr.mxu0 %v1568
        %1939 = vmatpush1.msra.mxu0 %v1567
        %1940 = vmatprep.subr.mxu0 %v1572
        %1941 = vmatpush1.msra.mxu0 %v1571
        %1942 = vmatprep.subr.mxu0 %v1576
        %1943 = vmatpush1.msra.mxu0 %v1575
        %1944 = vmatprep.subr.mxu0 %v1580
        %1945 = vmatpush1.msra.mxu0 %v1579
        %1946 = vmatprep.subr.mxu0 %v1584
        %1947 = vmatpush1.msra.mxu0 %v1583
        %1948 = vmatprep.subr.mxu0 %v1588
        %1949 = vmatpush1.msra.mxu0 %v1587
        %1950 = vmatprep.subr.mxu0 %v1592
        %1951 = vmatpush1.msra.mxu0 %v1591
        %1952 = vmatprep.subr.mxu0 %v1596
        %1953 = vmatpush1.msra.mxu0 %v1595
        %1954 = vmatprep.subr.mxu0 %v1600
        %1955 = vmatpush1.msra.mxu0 %v1599
        %1956 = vmatprep.subr.mxu0 %v1604
        %1957 = vmatpush1.msra.mxu0 %v1603
        %1958 = vmatprep.mubr.f32.mxu0 %v1606
        %1959 = vmatmul.mubr.f32.gmra.mrb[0].mxu0 %v1605
        %v1960 = vpop.f32.mrb[0].mxu0
        %v1961 = vadd.f32 %v1656, %v1960
        %v1962 = vpop.f32.mrb[0].mxu0
        %v1963 = vadd.f32 %v1656, %v1962
        %1964 = vmatprep.mubr.f32.mxu0 %v1608
        %1965 = vmatmul.mubr.f32.gmra.mrb[0].mxu0 %v1607
        %v1966 = vpop.f32.mrb[0].mxu0
        %v1967 = vadd.f32 %v1661, %v1966
        %v1968 = vpop.f32.mrb[0].mxu0
        %v1969 = vadd.f32 %v1661, %v1968
        %1970 = vmatprep.mubr.f32.mxu0 %v1610
        %1971 = vmatmul.mubr.f32.gmra.mrb[0].mxu0 %v1609
        %v1972 = vpop.f32.mrb[0].mxu0
        %v1973 = vadd.f32 %v1666, %v1972
        %v1974 = vpop.f32.mrb[0].mxu0
        %v1975 = vadd.f32 %v1666, %v1974
        %1976 = vmatprep.mubr.f32.mxu0 %v1612
        %1977 = vmatmul.mubr.f32.gmra.mrb[0].mxu0 %v1611
        %v1978 = vpop.f32.mrb[0].mxu0
        %v1979 = vadd.f32 %v1671, %v1978
        %v1980 = vpop.f32.mrb[0].mxu0
        %v1981 = vadd.f32 %v1671, %v1980
        %1982 = vmatprep.mubr.f32.mxu0 %v1614
        %1983 = vmatmul.mubr.f32.gmra.mrb[0].mxu0 %v1613
        %v1984 = vpop.f32.mrb[0].mxu0
        %v1985 = vadd.f32 %v1676, %v1984
        %v1986 = vpop.f32.mrb[0].mxu0
        %v1987 = vadd.f32 %v1676, %v1986
        %1988 = vmatprep.mubr.f32.mxu0 %v1616
        %1989 = vmatmul.mubr.f32.gmra.mrb[0].mxu0 %v1615
        %v1990 = vpop.f32.mrb[0].mxu0
        %v1991 = vadd.f32 %v1681, %v1990
        %v1992 = vpop.f32.mrb[0].mxu0
        %v1993 = vadd.f32 %v1681, %v1992
        %1994 = vmatprep.mubr.f32.mxu0 %v1618
        %1995 = vmatmul.mubr.f32.gmra.mrb[0].mxu0 %v1617
        %v1996 = vpop.f32.mrb[0].mxu0
        %v1997 = vadd.f32 %v1686, %v1996
        %v1998 = vpop.f32.mrb[0].mxu0
        %v1999 = vadd.f32 %v1686, %v1998
        %2000 = vmatprep.mubr.f32.mxu0 %v1620
        %2001 = vmatmul.mubr.f32.gmra.mrb[0].mxu0 %v1619
        %v2002 = vpop.f32.mrb[0].mxu0
        %v2003 = vadd.f32 %v1691, %v2002
        %v2004 = vpop.f32.mrb[0].mxu0
        %v2005 = vadd.f32 %v1691, %v2004
        %2006 = vmatprep.mubr.f32.mxu0 %v1622
        %2007 = vmatmul.mubr.f32.gmra.mrb[0].mxu0 %v1621
        %v2008 = vpop.f32.mrb[0].mxu0
        %v2009 = vadd.f32 %v1696, %v2008
        %v2010 = vpop.f32.mrb[0].mxu0
        %v2011 = vadd.f32 %v1696, %v2010
        %2012 = vmatprep.mubr.f32.mxu0 %v1624
        %2013 = vmatmul.mubr.f32.gmra.mrb[0].mxu0 %v1623
        %v2014 = vpop.f32.mrb[0].mxu0
        %v2015 = vadd.f32 %v1701, %v2014
        %v2016 = vpop.f32.mrb[0].mxu0
        %v2017 = vadd.f32 %v1701, %v2016
        %2018 = vmatprep.mubr.f32.mxu0 %v1626
        %2019 = vmatmul.mubr.f32.gmra.mrb[0].mxu0 %v1625
        %v2020 = vpop.f32.mrb[0].mxu0
        %v2021 = vadd.f32 %v1706, %v2020
        %v2022 = vpop.f32.mrb[0].mxu0
        %v2023 = vadd.f32 %v1706, %v2022
        %2024 = vmatprep.mubr.f32.mxu0 %v1628
        %2025 = vmatmul.mubr.f32.gmra.mrb[0].mxu0 %v1627
        %v2026 = vpop.f32.mrb[0].mxu0
        %v2027 = vadd.f32 %v1711, %v2026
        %v2028 = vpop.f32.mrb[0].mxu0
        %v2029 = vadd.f32 %v1711, %v2028
        %2030 = vmatprep.mubr.f32.mxu0 %v1630
        %2031 = vmatmul.mubr.f32.gmra.mrb[0].mxu0 %v1629
        %v2032 = vpop.f32.mrb[0].mxu0
        %v2033 = vadd.f32 %v1716, %v2032
        %v2034 = vpop.f32.mrb[0].mxu0
        %v2035 = vadd.f32 %v1716, %v2034
        %2036 = vmatprep.mubr.f32.mxu0 %v1632
        %2037 = vmatmul.mubr.f32.gmra.mrb[0].mxu0 %v1631
        %v2038 = vpop.f32.mrb[0].mxu0
        %v2039 = vadd.f32 %v1721, %v2038
        %v2040 = vpop.f32.mrb[0].mxu0
        %v2041 = vadd.f32 %v1721, %v2040
        %2042 = vmatprep.mubr.f32.mxu0 %v1634
        %2043 = vmatmul.mubr.f32.gmra.mrb[0].mxu0 %v1633
        %v2044 = vpop.f32.mrb[0].mxu0
        %v2045 = vadd.f32 %v1726, %v2044
        %v2046 = vpop.f32.mrb[0].mxu0
        %v2047 = vadd.f32 %v1726, %v2046
        %2048 = vmatprep.mubr.f32.mxu0 %v1636
        %2049 = vmatmul.mubr.f32.gmra.mrb[0].mxu0 %v1635
        %v2050 = vpop.f32.mrb[0].mxu0
        %v2051 = vadd.f32 %v1731, %v2050
        %v2052 = vpop.f32.mrb[0].mxu0
        %v2053 = vadd.f32 %v1731, %v2052
        %2054 = vdwg.mxu0
        %v2055 = vmax.f32 %v1800, 0.0
        %v2056 = vmax.f32 %v1802, 0.0
        %v2057 = vmax.f32 %v1961, 0.0
        %v2058 = vmax.f32 %v1963, 0.0
        %v2059 = vmax.f32 %v1806, 0.0
        %v2060 = vmax.f32 %v1808, 0.0
        %v2061 = vmax.f32 %v1967, 0.0
        %v2062 = vmax.f32 %v1969, 0.0
        %v2063 = vmax.f32 %v1812, 0.0
        %v2064 = vmax.f32 %v1814, 0.0
        %v2065 = vmax.f32 %v1973, 0.0
        %v2066 = vmax.f32 %v1975, 0.0
        %v2067 = vmax.f32 %v1818, 0.0
        %v2068 = vmax.f32 %v1820, 0.0
        %v2069 = vmax.f32 %v1979, 0.0
        %v2070 = vmax.f32 %v1981, 0.0
        %v2071 = vmax.f32 %v1824, 0.0
        %v2072 = vmax.f32 %v1826, 0.0
        %v2073 = vmax.f32 %v1985, 0.0
        %v2074 = vmax.f32 %v1987, 0.0
        %v2075 = vmax.f32 %v1830, 0.0
        %v2076 = vmax.f32 %v1832, 0.0
        %v2077 = vmax.f32 %v1991, 0.0
        %v2078 = vmax.f32 %v1993, 0.0
        %v2079 = vmax.f32 %v1836, 0.0
        %v2080 = vmax.f32 %v1838, 0.0
        %v2081 = vmax.f32 %v1997, 0.0
        %v2082 = vmax.f32 %v1999, 0.0
        %v2083 = vmax.f32 %v1842, 0.0
        %v2084 = vmax.f32 %v1844, 0.0
        %v2085 = vmax.f32 %v2003, 0.0
        %v2086 = vmax.f32 %v2005, 0.0
        %v2087 = vmax.f32 %v1848, 0.0
        %v2088 = vmax.f32 %v1850, 0.0
        %v2089 = vmax.f32 %v2009, 0.0
        %v2090 = vmax.f32 %v2011, 0.0
        %v2091 = vmax.f32 %v1854, 0.0
        %v2092 = vmax.f32 %v1856, 0.0
        %v2093 = vmax.f32 %v2015, 0.0
        %v2094 = vmax.f32 %v2017, 0.0
        %v2095 = vmax.f32 %v1860, 0.0
        %v2096 = vmax.f32 %v1862, 0.0
        %v2097 = vmax.f32 %v2021, 0.0
        %v2098 = vmax.f32 %v2023, 0.0
        %v2099 = vmax.f32 %v1866, 0.0
        %v2100 = vmax.f32 %v1868, 0.0
        %v2101 = vmax.f32 %v2027, 0.0
        %v2102 = vmax.f32 %v2029, 0.0
        %v2103 = vmax.f32 %v1872, 0.0
        %v2104 = vmax.f32 %v1874, 0.0
        %v2105 = vmax.f32 %v2033, 0.0
        %v2106 = vmax.f32 %v2035, 0.0
        %v2107 = vmax.f32 %v1878, 0.0
        %v2108 = vmax.f32 %v1880, 0.0
        %v2109 = vmax.f32 %v2039, 0.0
        %v2110 = vmax.f32 %v2041, 0.0
        %v2111 = vmax.f32 %v1884, 0.0
        %v2112 = vmax.f32 %v1886, 0.0
        %v2113 = vmax.f32 %v2045, 0.0
        %v2114 = vmax.f32 %v2047, 0.0
        %v2115 = vmax.f32 %v1890, 0.0
        %v2116 = vmax.f32 %v1892, 0.0
        %v2117 = vmax.f32 %v2051, 0.0
        %v2118 = vmax.f32 %v2053, 0.0
        %v2119 = vld [vmem:[%s7] sm:$0xff]
        %v2120 = vld [vmem:[%s7 + $0x8] sm:$0xff]
        %v2121 = vld [vmem:[%s7 + $0x10] sm:$0xff]
        %v2122 = vld [vmem:[%s7 + $0x18] sm:$0xff]
        %v2123 = vld [vmem:[%s7 + $0x20] sm:$0xff]
        %v2124 = vld [vmem:[%s7 + $0x28] sm:$0xff]
        %v2125 = vld [vmem:[%s7 + $0x30] sm:$0xff]
        %v2126 = vld [vmem:[%s7 + $0x38] sm:$0xff]
        %v2127 = vld [vmem:[%s7 + $0x40] sm:$0xff]
        %v2128 = vld [vmem:[%s7 + $0x48] sm:$0xff]
        %v2129 = vld [vmem:[%s7 + $0x50] sm:$0xff]
        %v2130 = vld [vmem:[%s7 + $0x58] sm:$0xff]
        %v2131 = vld [vmem:[%s7 + $0x60] sm:$0xff]
        %v2132 = vld [vmem:[%s7 + $0x68] sm:$0xff]
        %v2133 = vld [vmem:[%s7 + $0x70] sm:$0xff]
        %v2134 = vld [vmem:[%s7 + $0x78] sm:$0xff]
        %2136 = vset.pattern.permute.xlu0 0
        %2137 = vperm.xlu0 %2136, %v2119
        %v2138 = vpop.permute.xlu0 %2137
        %2141 = vset.pattern.permute.xlu0 0
        %2142 = vperm.xlu0 %2141, %v2120
        %v2143 = vpop.permute.xlu0 %2142
        %2146 = vset.pattern.permute.xlu0 0
        %2147 = vperm.xlu0 %2146, %v2121
        %v2148 = vpop.permute.xlu0 %2147
        %2151 = vset.pattern.permute.xlu0 0
        %2152 = vperm.xlu0 %2151, %v2122
        %v2153 = vpop.permute.xlu0 %2152
        %2156 = vset.pattern.permute.xlu0 0
        %2157 = vperm.xlu0 %2156, %v2123
        %v2158 = vpop.permute.xlu0 %2157
        %2161 = vset.pattern.permute.xlu0 0
        %2162 = vperm.xlu0 %2161, %v2124
        %v2163 = vpop.permute.xlu0 %2162
        %2166 = vset.pattern.permute.xlu0 0
        %2167 = vperm.xlu0 %2166, %v2125
        %v2168 = vpop.permute.xlu0 %2167
        %2171 = vset.pattern.permute.xlu0 0
        %2172 = vperm.xlu0 %2171, %v2126
        %v2173 = vpop.permute.xlu0 %2172
        %2176 = vset.pattern.permute.xlu0 0
        %2177 = vperm.xlu0 %2176, %v2127
        %v2178 = vpop.permute.xlu0 %2177
        %2181 = vset.pattern.permute.xlu0 0
        %2182 = vperm.xlu0 %2181, %v2128
        %v2183 = vpop.permute.xlu0 %2182
        %2186 = vset.pattern.permute.xlu0 0
        %2187 = vperm.xlu0 %2186, %v2129
        %v2188 = vpop.permute.xlu0 %2187
        %2191 = vset.pattern.permute.xlu0 0
        %2192 = vperm.xlu0 %2191, %v2130
        %v2193 = vpop.permute.xlu0 %2192
        %2196 = vset.pattern.permute.xlu0 0
        %2197 = vperm.xlu0 %2196, %v2131
        %v2198 = vpop.permute.xlu0 %2197
        %2201 = vset.pattern.permute.xlu0 0
        %2202 = vperm.xlu0 %2201, %v2132
        %v2203 = vpop.permute.xlu0 %2202
        %2206 = vset.pattern.permute.xlu0 0
        %2207 = vperm.xlu0 %2206, %v2133
        %v2208 = vpop.permute.xlu0 %2207
        %2211 = vset.pattern.permute.xlu0 0
        %2212 = vperm.xlu0 %2211, %v2134
        %v2213 = vpop.permute.xlu0 %2212
        %v2215 = vmul.f32 %v2138, %v2055
        %v2216 = vmul.f32 %v2138, %v2056
        %v2217 = vmul.f32 %v2138, %v2057
        %v2218 = vmul.f32 %v2138, %v2058
        %v2219 = vmul.f32 %v2143, %v2059
        %v2220 = vmul.f32 %v2143, %v2060
        %v2221 = vmul.f32 %v2143, %v2061
        %v2222 = vmul.f32 %v2143, %v2062
        %v2223 = vmul.f32 %v2148, %v2063
        %v2224 = vmul.f32 %v2148, %v2064
        %v2225 = vmul.f32 %v2148, %v2065
        %v2226 = vmul.f32 %v2148, %v2066
        %v2227 = vmul.f32 %v2153, %v2067
        %v2228 = vmul.f32 %v2153, %v2068
        %v2229 = vmul.f32 %v2153, %v2069
        %v2230 = vmul.f32 %v2153, %v2070
        %v2231 = vmul.f32 %v2158, %v2071
        %v2232 = vmul.f32 %v2158, %v2072
        %v2233 = vmul.f32 %v2158, %v2073
        %v2234 = vmul.f32 %v2158, %v2074
        %v2235 = vmul.f32 %v2163, %v2075
        %v2236 = vmul.f32 %v2163, %v2076
        %v2237 = vmul.f32 %v2163, %v2077
        %v2238 = vmul.f32 %v2163, %v2078
        %v2239 = vmul.f32 %v2168, %v2079
        %v2240 = vmul.f32 %v2168, %v2080
        %v2241 = vmul.f32 %v2168, %v2081
        %v2242 = vmul.f32 %v2168, %v2082
        %v2243 = vmul.f32 %v2173, %v2083
        %v2244 = vmul.f32 %v2173, %v2084
        %v2245 = vmul.f32 %v2173, %v2085
        %v2246 = vmul.f32 %v2173, %v2086
        %v2247 = vmul.f32 %v2178, %v2087
        %v2248 = vmul.f32 %v2178, %v2088
        %v2249 = vmul.f32 %v2178, %v2089
        %v2250 = vmul.f32 %v2178, %v2090
        %v2251 = vmul.f32 %v2183, %v2091
        %v2252 = vmul.f32 %v2183, %v2092
        %v2253 = vmul.f32 %v2183, %v2093
        %v2254 = vmul.f32 %v2183, %v2094
        %v2255 = vmul.f32 %v2188, %v2095
        %v2256 = vmul.f32 %v2188, %v2096
        %v2257 = vmul.f32 %v2188, %v2097
        %v2258 = vmul.f32 %v2188, %v2098
        %v2259 = vmul.f32 %v2193, %v2099
        %v2260 = vmul.f32 %v2193, %v2100
        %v2261 = vmul.f32 %v2193, %v2101
        %v2262 = vmul.f32 %v2193, %v2102
        %v2263 = vmul.f32 %v2198, %v2103
        %v2264 = vmul.f32 %v2198, %v2104
        %v2265 = vmul.f32 %v2198, %v2105
        %v2266 = vmul.f32 %v2198, %v2106
        %v2267 = vmul.f32 %v2203, %v2107
        %v2268 = vmul.f32 %v2203, %v2108
        %v2269 = vmul.f32 %v2203, %v2109
        %v2270 = vmul.f32 %v2203, %v2110
        %v2271 = vmul.f32 %v2208, %v2111
        %v2272 = vmul.f32 %v2208, %v2112
        %v2273 = vmul.f32 %v2208, %v2113
        %v2274 = vmul.f32 %v2208, %v2114
        %v2275 = vmul.f32 %v2213, %v2115
        %v2276 = vmul.f32 %v2213, %v2116
        %v2277 = vmul.f32 %v2213, %v2117
        %v2278 = vmul.f32 %v2213, %v2118
        %v2279 = vadd.f32 %v2215, %v2219
        %v2280 = vadd.f32 %v2279, %v2223
        %v2281 = vadd.f32 %v2280, %v2227
        %v2282 = vadd.f32 %v2281, %v2231
        %v2283 = vadd.f32 %v2282, %v2235
        %v2284 = vadd.f32 %v2283, %v2239
        %v2285 = vadd.f32 %v2284, %v2243
        %v2286 = vadd.f32 %v2285, %v2247
        %v2287 = vadd.f32 %v2286, %v2251
        %v2288 = vadd.f32 %v2287, %v2255
        %v2289 = vadd.f32 %v2288, %v2259
        %v2290 = vadd.f32 %v2289, %v2263
        %v2291 = vadd.f32 %v2290, %v2267
        %v2292 = vadd.f32 %v2291, %v2271
        %v2293 = vadd.f32 %v2292, %v2275
        %v2294 = vrot.slane %v2293, 4
        %v2295 = vadd.f32 %v2293, %v2294
        %v2296 = vrot.slane %v2295, 2
        %v2297 = vadd.f32 %v2295, %v2296
        %v2298 = vrot.slane %v2297, 1
        %v2299 = vadd.f32 %v2297, %v2298
        %v2300 = vadd.f32 %v2216, %v2220
        %v2301 = vadd.f32 %v2300, %v2224
        %v2302 = vadd.f32 %v2301, %v2228
        %v2303 = vadd.f32 %v2302, %v2232
        %v2304 = vadd.f32 %v2303, %v2236
        %v2305 = vadd.f32 %v2304, %v2240
        %v2306 = vadd.f32 %v2305, %v2244
        %v2307 = vadd.f32 %v2306, %v2248
        %v2308 = vadd.f32 %v2307, %v2252
        %v2309 = vadd.f32 %v2308, %v2256
        %v2310 = vadd.f32 %v2309, %v2260
        %v2311 = vadd.f32 %v2310, %v2264
        %v2312 = vadd.f32 %v2311, %v2268
        %v2313 = vadd.f32 %v2312, %v2272
        %v2314 = vadd.f32 %v2313, %v2276
        %v2315 = vrot.slane %v2314, 4
        %v2316 = vadd.f32 %v2314, %v2315
        %v2317 = vrot.slane %v2316, 2
        %v2318 = vadd.f32 %v2316, %v2317
        %v2319 = vrot.slane %v2318, 1
        %v2320 = vadd.f32 %v2318, %v2319
        %v2321 = vadd.f32 %v2217, %v2221
        %v2322 = vadd.f32 %v2321, %v2225
        %v2323 = vadd.f32 %v2322, %v2229
        %v2324 = vadd.f32 %v2323, %v2233
        %v2325 = vadd.f32 %v2324, %v2237
        %v2326 = vadd.f32 %v2325, %v2241
        %v2327 = vadd.f32 %v2326, %v2245
        %v2328 = vadd.f32 %v2327, %v2249
        %v2329 = vadd.f32 %v2328, %v2253
        %v2330 = vadd.f32 %v2329, %v2257
        %v2331 = vadd.f32 %v2330, %v2261
        %v2332 = vadd.f32 %v2331, %v2265
        %v2333 = vadd.f32 %v2332, %v2269
        %v2334 = vadd.f32 %v2333, %v2273
        %v2335 = vadd.f32 %v2334, %v2277
        %v2336 = vrot.slane %v2335, 4
        %v2337 = vadd.f32 %v2335, %v2336
        %v2338 = vrot.slane %v2337, 2
        %v2339 = vadd.f32 %v2337, %v2338
        %v2340 = vrot.slane %v2339, 1
        %v2341 = vadd.f32 %v2339, %v2340
        %v2342 = vadd.f32 %v2218, %v2222
        %v2343 = vadd.f32 %v2342, %v2226
        %v2344 = vadd.f32 %v2343, %v2230
        %v2345 = vadd.f32 %v2344, %v2234
        %v2346 = vadd.f32 %v2345, %v2238
        %v2347 = vadd.f32 %v2346, %v2242
        %v2348 = vadd.f32 %v2347, %v2246
        %v2349 = vadd.f32 %v2348, %v2250
        %v2350 = vadd.f32 %v2349, %v2254
        %v2351 = vadd.f32 %v2350, %v2258
        %v2352 = vadd.f32 %v2351, %v2262
        %v2353 = vadd.f32 %v2352, %v2266
        %v2354 = vadd.f32 %v2353, %v2270
        %v2355 = vadd.f32 %v2354, %v2274
        %v2356 = vadd.f32 %v2355, %v2278
        %v2357 = vrot.slane %v2356, 4
        %v2358 = vadd.f32 %v2356, %v2357
        %v2359 = vrot.slane %v2358, 2
        %v2360 = vadd.f32 %v2358, %v2359
        %v2361 = vrot.slane %v2360, 1
        %v2362 = vadd.f32 %v2360, %v2361
        %v2363 = vld [vmem:[#allocation2] sm:$0x1]
        %2365 = vset.pattern.permute.xlu0 0
        %2366 = vperm.xlu0 %2365, %v2363
        %v2367 = vpop.permute.xlu0 %2366
        %v2369 = vlaneseq
        %v2370 = vshrl.u32 %v2369, 7
        %v2371 = vsub.s32 0, %v2370
        %v2372 = vrot.slane %v2367, %v2371
        %v2373 = vadd.f32 %v2299, %v2372
        %v2374 = vadd.f32 %v2320, %v2372
        %v2375 = vadd.f32 %v2341, %v2372
        %v2376 = vadd.f32 %v2362, %v2372
        %v2377 = vmax.f32 %v2373, 0.0
        %v2378 = vmax.f32 %v2374, 0.0
        %v2379 = vmax.f32 %v2375, 0.0
        %v2380 = vmax.f32 %v2376, 0.0
        %v2385 = vcombine.low %v2377, %v2378
        %v2386 = vcombine.low %v2379, %v2380
        %v2388 = vunpack.c.l.s4 1966171168
        %v2389 = vunpack.c.0.s8 %v2388
        %v2390 = vlaneseq
        %v2391 = vshrl.u32 %v2390, 7
        %v2392 = vsub.s32 %v2389, %v2391
        %v2393 = vrot.slane %v2385, %v2392
        %v2395 = vunpack.c.l.s4 1966171168
        %v2396 = vunpack.c.0.s8 %v2395
        %v2397 = vlaneseq
        %v2398 = vshrl.u32 %v2397, 7
        %v2399 = vsub.s32 %v2396, %v2398
        %v2400 = vrot.slane %v2386, %v2399
        %v2401 = vcombine.low %v2393, %v2400
        %v2403 = vunpack.c.l.s4 1966171168
        %v2404 = vunpack.c.0.s8 %v2403
        %v2405 = vlaneseq
        %v2406 = vshrl.u32 %v2405, 7
        %v2407 = vsub.s32 %v2404, %v2406
        %v2408 = vrot.slane %v2401, %v2407
        %v2410 = vlaneseq
        %vm2411 = vcmp.ge.s32.totalorder %v2410, 0
        %vm2412 = vcmp.lt.s32.totalorder %v2410, 512
        %vm2413 = vmand %vm2411, %vm2412
        %2414 = vst.msk [vmem:[%s326] sm:$0xf] %vm2413, %v2408
        %s2415 = sand.u32 %s227, 1
        %s2416 = scalar_lea.sflag [#allocation4], %s2415
        %s2417 = sand.u32 %s227, 1
        %s2418 = smul.addr %s2417, 4
        %s2419 = scalar_lea.vmem [#allocation3], %s2418
        // Predicated region
        $region57: #{tpu_custom_call.1} parent=55 // pred_check
          %p2420 = pneg %p237
        $region58: #{tpu_custom_call.1} parent=55 // pred_check_branch
          %2422 = sbr.rel (%p2420) target = $region60
        $region59: #{tpu_custom_call.1} parent=55 // pred_region
          %s2423 = smul.u32 4, %s25
          %s2425 = ssub.s32 64, 64
          %2426 = vsyncadd %s2416, %s2425
          %s2427 = smul.addr %s2423, 16
          %s2428 = scalar_lea.hbm %s9, %s2427
          %s2430 = sshll.u32 %s2419, 4
          %s2431 = int_to_ptr.vmem [resolvable:$true] %s2430
          %2433 = dma.vmem_to_hbm [thread:$0]  %s2431, 64, %s2428, %s2416
        $region60: #{tpu_custom_call.1} parent=55 // pred_fallthru
          _
      $region56: #{tpu_custom_call.1} parent=5 // pred_fallthru
        _
      %p2434 = scmp.le.s32.totalorder 2, %s20
      // Predicated region
      $region61: #{tpu_custom_call.1} parent=5 // pred_check
        %p2435 = pneg %p2434
      $region62: #{tpu_custom_call.1} parent=5 // pred_check_branch
        %2437 = sbr.rel (%p2435) target = $region64
      $region63: #{tpu_custom_call.1} parent=5 // pred_region
        %s2438 = ssub.s32 %s20, 2
        // Predicated region
        $region65: #{tpu_custom_call.1} parent=63 // pred_check
          %p2439 = pneg %p243
        $region66: #{tpu_custom_call.1} parent=63 // pred_check_branch
          %2441 = sbr.rel (%p2439) target = $region68
        $region67: #{tpu_custom_call.1} parent=63 // pred_region
          %s2442 = sand.u32 %s228, 1
          %s2443 = scalar_lea.sflag [#allocation4], %s2442
          %s2444 = sand.u32 %s228, 1
          %s2445 = smul.addr %s2444, 4
          %s2446 = scalar_lea.vmem [#allocation3], %s2445
          %2447 = dma.done %s2443, 64
        $region68: #{tpu_custom_call.1} parent=63 // pred_fallthru
          _
      $region64: #{tpu_custom_call.1} parent=5 // pred_fallthru
        _
    $region6: #{tpu_custom_call.1} parent=1 // loop_footer
      %s24 = sadd.s32 1, %s20
    $region7: #{tpu_custom_call.1} parent=1 // loop_footer_branch
      %19 = sbr.rel target = $region3
    $region8: #{tpu_custom_call.1} parent=1 // loop_exit
      _
    %2448 = vsyncpa [#allocation4], 1
    %s2449 = scalar_lea.sflag [#allocation4], 1
    %2450 = vsyncpa %s2449, 1

</llo_original>
